<compile_context>
chip_gen: v7x
topology: tpu7x:2x2x1
jax: 0.10.0
libtpu: 0.0.40
codegen_flags: <defaults>
</compile_context>

<pallas_src>
import functools
import math

import jax
import jax.numpy as jnp
from jax.experimental import pallas as pl
from jax.experimental.pallas import tpu as pltpu


# ----------------------------------------------------------------------------- kernel
def _mhga_kernel(q_ref, kp_ref, vp_ref, wg_ref,
                 wq_ref, bq_ref, wo_ref, bo_ref,
                 lng_ref, lnb_ref,
                 out_ref, acc_ref,
                 *, hb, n_hblk, d_k, d_v, ln_eps, exact_recip):
    """One (batch, query-tile, head-block) grid step.

    The head-block axis is the innermost ("arbitrary") reduction axis: each
    head block's fc_o contribution is accumulated into a f32 VMEM scratch and
    the residual + LayerNorm epilogue runs on the last head-block step.
    """
    hbi = pl.program_id(2)
    cdt = q_ref.dtype                      # MXU compute dtype (f32 or bf16)

    @pl.when(hbi == 0)
    def _init():
        acc_ref[...] = jnp.zeros_like(acc_ref)

    q_in = q_ref[0]                        # (tq, d_model)

    # Packed Q projection for this head block (1/sqrt(d_k) folded into wq/bq).
    q_proj = jnp.dot(q_in, wq_ref[0], preferred_element_type=jnp.float32) \
        + bq_ref[0]                        # (tq, hb*d_k) f32

    head_outs = []
    for hi in range(hb):                   # static, unrolled
        q_h = q_proj[:, hi * d_k:(hi + 1) * d_k].astype(cdt)       # (tq, d_k)
        k_h = kp_ref[0, hi]                                        # (nk, d_k)
        v_h = vp_ref[0, hi]                                        # (nk, d_v)

        # Q @ K^T without materializing a transposed copy of K.
        att = jax.lax.dot_general(
            q_h, k_h, dimension_numbers=(((1,), (1,)), ((), ())),
            preferred_element_type=jnp.float32)                    # (tq, nk) f32

        # Geometry bias:  w_mn = -w_g + att   (matches the PyTorch module).
        logits = att - wg_ref[0, hi].astype(jnp.float32)

        # Softmax over keys (f32 statistics).  Normalization is applied AFTER
        # the PV matmul, i.e. on a (tq, d_v) tensor instead of (tq, nk).
        m = jnp.max(logits, axis=-1, keepdims=True)
        e = jnp.exp(logits - m)
        s = jnp.sum(e, axis=-1, keepdims=True)
        head_un = jnp.dot(e.astype(cdt), v_h,
                          preferred_element_type=jnp.float32)      # (tq, d_v)
        if exact_recip:
            inv = 1.0 / s
        else:
            inv = pl.reciprocal(s, approx=True)
        head_outs.append(head_un * inv)
    # TODO(synk): flash-style nk tiling (extra "arbitrary" grid axis + online
    # softmax) for very long key sequences on v7x's 64 MiB VMEM.

    heads = head_outs[0] if hb == 1 else jnp.concatenate(head_outs, axis=-1)

    # Packed fc_o for this head block, accumulated across head blocks.
    acc_ref[...] += jnp.dot(heads.astype(cdt), wo_ref[0],
                            preferred_element_type=jnp.float32)    # (tq, d_model)

    @pl.when(hbi == n_hblk - 1)
    def _finalize():
        attn_out = acc_ref[...] + bo_ref[...]                      # (tq, d_model)
        resid = q_in.astype(jnp.float32) + attn_out
        mean = jnp.mean(resid, axis=-1, keepdims=True)
        cent = resid - mean
        var = jnp.mean(cent * cent, axis=-1, keepdims=True)
        normed = cent * jax.lax.rsqrt(var + ln_eps)
        out_ref[0] = (normed * lng_ref[...] + lnb_ref[...]).astype(out_ref.dtype)


# ----------------------------------------------------------------------------- helpers
def _padded_bytes(shape, itemsize):
    dims = list(shape)
    dims[-1] = -(-dims[-1] // 128) * 128
    if len(dims) >= 2:
        dims[-2] = -(-dims[-2] // 8) * 8
    n = 1
    for d in dims:
        n *= d
    return n * itemsize


def _vmem_need(tq, nk, d_model, hb, d_k, d_v, n_hblk, isz, gisz, geom_buf):
    """Live-VMEM estimate: per-step-changing blocks x buffer depth, constant
    blocks once, plus the f32 in-kernel temporaries."""
    hd_buf = 2 if n_hblk > 1 else 1        # head-block-indexed inputs
    need = 0
    need += 2 * _padded_bytes((tq, d_model), isz)                  # q block
    need += 2 * _padded_bytes((tq, d_model), isz)                  # out block
    need += geom_buf * hb * _padded_bytes((tq, nk), gisz)          # geometry
    need += hd_buf * hb * _padded_bytes((nk, d_k), isz)            # K proj
    need += hd_buf * hb * _padded_bytes((nk, d_v), isz)            # V proj
    need += hd_buf * (_padded_bytes((d_model, hb * d_k), isz)
                      + _padded_bytes((1, hb * d_k), 4)
                      + _padded_bytes((hb * d_v, d_model), isz))   # wq, bq, wo
    need += 3 * _padded_bytes((1, d_model), 4)                     # bo, ln g/b
    need += _padded_bytes((tq, d_model), 4)                        # acc scratch
    need += 3 * _padded_bytes((tq, nk), 4)                         # logits/e temps
    need += _padded_bytes((tq, hb * d_k), 4)                       # q_proj
    need += _padded_bytes((tq, hb * d_v), 4)                       # heads concat
    return need


def _q_tile_candidates(nq):
    """Legal query tiles: multiples of 8 dividing nq, plus the full nq
    (a block equal to the full dim is always legal).  Descending order."""
    cands = {nq}
    cands.update(t for t in range(8, nq, 8) if nq % t == 0)
    return sorted(cands, reverse=True)


# ----------------------------------------------------------------------------- wrapper
def multi_head_geometry_attention(queries, keys, values, rel_geom_w, params,
                                  *, h, d_k, d_v, ln_eps=1e-5,
                                  q_tile=None, head_block=None):
    B, nq, d_model = queries.shape
    nk = keys.shape[1]
    wq, bq, wk, bk, wv, bv, wo, bo, ln_g, ln_b = params
    cdt = queries.dtype
    isz = jnp.dtype(cdt).itemsize
    f32 = jnp.float32

    # ---- head blocking: pack Hb heads per grid step so the Q / fc_o matmuls
    # fill the MXU (target ~256 lanes along the packed head*d_k axis).
    if head_block is None:
        hb = min(h, max(1, 256 // max(d_k, 1)))
        while h % hb != 0:
            hb -= 1
    else:
        hb = head_block
        assert h % hb == 0
    n_hblk = h // hb

    # ---- hoist the K/V per-head projections out of the kernel (computed once
    # per sequence, NOT once per query tile) as plain XLA matmuls.
    k_proj = keys.astype(f32) @ wk.astype(f32) + bk.astype(f32)
    k_proj = k_proj.reshape(B, nk, h, d_k).transpose(0, 2, 1, 3).astype(cdt)
    v_proj = values.astype(f32) @ wv.astype(f32) + bv.astype(f32)
    v_proj = v_proj.reshape(B, nk, h, d_v).transpose(0, 2, 1, 3).astype(cdt)

    # ---- fold 1/sqrt(d_k) into the Q projection; split weights per head block.
    scale = 1.0 / math.sqrt(d_k)
    wq_blk = (wq.astype(f32) * scale).reshape(d_model, n_hblk, hb * d_k)
    wq_blk = wq_blk.transpose(1, 0, 2).astype(cdt)         # (n_hblk, d_model, hb*d_k)
    bq_blk = (bq.astype(f32) * scale).reshape(n_hblk, 1, hb * d_k)
    wo_blk = wo.astype(cdt).reshape(n_hblk, hb * d_v, d_model)
    bo2 = bo.astype(f32).reshape(1, d_model)
    lng = ln_g.astype(f32).reshape(1, d_model)
    lnb = ln_b.astype(f32).reshape(1, d_model)

    # ---- geometry bias streamed in the compute dtype (bf16 halves the
    # dominant HBM stream); upcast to f32 at the subtract inside the kernel.
    wg = rel_geom_w.astype(cdt)
    gisz = jnp.dtype(wg.dtype).itemsize

    # ---- generation-aware query tile + VMEM budget.
    try:
        vmem_cap = int(pltpu.get_tpu_info().vmem_capacity_bytes)
    except Exception:
        vmem_cap = 64 * 1024 * 1024        # conservative (v7x-sized) fallback
    budget = int(0.85 * vmem_cap)

    cands = _q_tile_candidates(nq)
    if q_tile is not None:
        tq = q_tile
        assert nq % tq == 0
    else:
        fitting = [t for t in cands
                   if _vmem_need(t, nk, d_model, hb, d_k, d_v, n_hblk,
                                 isz, gisz, 2) <= budget]
        # keep >= 2 units of "parallel" grid work (v7x has 2 TensorCores).
        pref = [t for t in fitting if B * (nq // t) >= 2]
        if pref:
            tq = pref[0]
        elif fitting:
            tq = fitting[0]
        else:
            tq = cands[-1]                 # smallest legal tile; correctness first

    grid = (B, nq // tq, n_hblk)
    n_steps = B * (nq // tq) * n_hblk

    # ---- pipeline depth on the geometry stream (the only input that moves a
    # full tile every grid step): go 3-deep when there is enough work and room.
    geom_buf = 2
    if n_steps >= 4 and _vmem_need(tq, nk, d_model, hb, d_k, d_v, n_hblk,
                                   isz, gisz, 3) <= budget:
        geom_buf = 3

    need = _vmem_need(tq, nk, d_model, hb, d_k, d_v, n_hblk, isz, gisz, geom_buf)
    vmem_limit = int(min(budget, max(int(need * 1.25), 32 * 1024 * 1024)))

    geom_kwargs = {}
    if geom_buf != 2:
        geom_kwargs = dict(pipeline_mode=pl.Buffered(geom_buf))

    in_specs = [
        pl.BlockSpec((1, tq, d_model), lambda b, qt, g: (b, qt, 0)),        # queries
        pl.BlockSpec((1, hb, nk, d_k), lambda b, qt, g: (b, g, 0, 0)),      # K proj
        pl.BlockSpec((1, hb, nk, d_v), lambda b, qt, g: (b, g, 0, 0)),      # V proj
        pl.BlockSpec((1, hb, tq, nk), lambda b, qt, g: (b, g, qt, 0),       # geometry
                     **geom_kwargs),
        pl.BlockSpec((1, d_model, hb * d_k), lambda b, qt, g: (g, 0, 0)),   # wq (block)
        pl.BlockSpec((1, 1, hb * d_k), lambda b, qt, g: (g, 0, 0)),         # bq (block)
        pl.BlockSpec((1, hb * d_v, d_model), lambda b, qt, g: (g, 0, 0)),   # wo (block)
        pl.BlockSpec((1, d_model), lambda b, qt, g: (0, 0)),                # bo
        pl.BlockSpec((1, d_model), lambda b, qt, g: (0, 0)),                # ln gamma
        pl.BlockSpec((1, d_model), lambda b, qt, g: (0, 0)),                # ln beta
    ]
    out_spec = pl.BlockSpec((1, tq, d_model), lambda b, qt, g: (b, qt, 0))

    kernel = functools.partial(
        _mhga_kernel, hb=hb, n_hblk=n_hblk, d_k=d_k, d_v=d_v,
        ln_eps=ln_eps, exact_recip=(cdt == jnp.float32))

    # TODO(synk): attention_mask / attention_weights (None in this forward
    # path) and stateful running_keys/values are not implemented; dropout is
    # identity (eval mode).
    return pl.pallas_call(
        kernel,
        out_shape=jax.ShapeDtypeStruct((B, nq, d_model), queries.dtype),
        grid=grid,
        in_specs=in_specs,
        out_specs=out_spec,
        scratch_shapes=[pltpu.VMEM((tq, d_model), jnp.float32)],
        compiler_params=pltpu.CompilerParams(
            dimension_semantics=("parallel", "parallel", "arbitrary"),
            vmem_limit_bytes=vmem_limit),
    )(queries, k_proj, v_proj, wg,
      wq_blk, bq_blk, wo_blk, bo2, lng, lnb)


# ----------------------------------------------------------------------------- params / reference
def _xavier_uniform(key, fan_in, fan_out, dtype=jnp.float32):
    bound = math.sqrt(6.0 / (fan_in + fan_out))
    # stored as (in, out) so forward is x @ W (equivalent to PyTorch x @ W.T)
    return jax.random.uniform(key, (fan_in, fan_out), dtype, -bound, bound)


def make_params(key, d_model, d_k, d_v, h):
    ks = jax.random.split(key, 4)
    wq = _xavier_uniform(ks[0], d_model, h * d_k)
    wk = _xavier_uniform(ks[1], d_model, h * d_k)
    wv = _xavier_uniform(ks[2], d_model, h * d_v)
    wo = _xavier_uniform(ks[3], h * d_v, d_model)
    bq = jnp.zeros((h * d_k,), jnp.float32)
    bk = jnp.zeros((h * d_k,), jnp.float32)
    bv = jnp.zeros((h * d_v,), jnp.float32)
    bo = jnp.zeros((d_model,), jnp.float32)
    ln_g = jnp.ones((d_model,), jnp.float32)
    ln_b = jnp.zeros((d_model,), jnp.float32)
    return (wq, bq, wk, bk, wv, bv, wo, bo, ln_g, ln_b)


def reference_forward(queries, keys, values, rel_geom_w, params, *, h, d_k, d_v, ln_eps=1e-5):
    """Pure-JAX reference mirroring the PyTorch module in eval mode."""
    wq, bq, wk, bk, wv, bv, wo, bo, ln_g, ln_b = params
    B, nq, d_model = queries.shape
    nk = keys.shape[1]
    q = (queries @ wq + bq).reshape(B, nq, h, d_k).transpose(0, 2, 1, 3)
    k = (keys @ wk + bk).reshape(B, nk, h, d_k).transpose(0, 2, 3, 1)
    v = (values @ wv + bv).reshape(B, nk, h, d_v).transpose(0, 2, 1, 3)
    att = (q @ k) / math.sqrt(d_k)
    w_mn = -rel_geom_w + att
    w_mn = jax.nn.softmax(w_mn, axis=-1)
    out = (w_mn @ v).transpose(0, 2, 1, 3).reshape(B, nq, h * d_v)
    out = out @ wo + bo
    resid = queries + out
    mean = resid.mean(-1, keepdims=True)
    var = ((resid - mean) ** 2).mean(-1, keepdims=True)
    return (resid - mean) / jnp.sqrt(var + ln_eps) * ln_g + ln_b


# ----------------------------------------------------------------------------- main
if __name__ == "__main__":
    # ---- config 1: tiny shapes, single head block, no query tiling -----------
    d_model, d_k, d_v, h = 32, 8, 8, 4
    B, nq, nk = 2, 8, 8

    key = jax.random.PRNGKey(0)
    k_param, k_q, k_k, k_v, k_g = jax.random.split(key, 5)
    params = make_params(k_param, d_model, d_k, d_v, h)

    queries = jax.random.normal(k_q, (B, nq, d_model), jnp.float32)
    keys = jax.random.normal(k_k, (B, nk, d_model), jnp.float32)
    values = jax.random.normal(k_v, (B, nk, d_model), jnp.float32)
    rel_geom_w = jax.random.uniform(k_g, (B, h, nq, nk), jnp.float32)

    ref = reference_forward(queries, keys, values, rel_geom_w, params,
                            h=h, d_k=d_k, d_v=d_v)

    # f32 path
    out = multi_head_geometry_attention(queries, keys, values, rel_geom_w, params,
                                        h=h, d_k=d_k, d_v=d_v)
    out = jax.block_until_ready(out)
    assert out.shape == (B, nq, d_model)
    assert jnp.allclose(out, ref, atol=5e-3, rtol=5e-3), "f32 mismatch vs reference"

    # bf16 MXU path (softmax / LayerNorm statistics stay f32 inside the kernel;
    # geometry bias streamed in bf16).
    q16 = queries.astype(jnp.bfloat16)
    k16 = keys.astype(jnp.bfloat16)
    v16 = values.astype(jnp.bfloat16)
    wg16 = rel_geom_w.astype(jnp.bfloat16)
    out16 = multi_head_geometry_attention(q16, k16, v16, wg16, params,
                                          h=h, d_k=d_k, d_v=d_v)
    out16 = jax.block_until_ready(out16)
    assert out16.shape == (B, nq, d_model)
    assert jnp.allclose(out16.astype(jnp.float32), ref, atol=1e-1, rtol=1e-1), \
        "bf16 mismatch vs reference"

    # ---- config 2: exercises query tiling + multi-step head-block reduction --
    d_model2, d_k2, d_v2, h2 = 64, 16, 16, 4
    B2, nq2, nk2 = 2, 32, 24
    k2 = jax.random.PRNGKey(1)
    kp2, kq2, kk2, kv2, kg2 = jax.random.split(k2, 5)
    params2 = make_params(kp2, d_model2, d_k2, d_v2, h2)
    q2 = jax.random.normal(kq2, (B2, nq2, d_model2), jnp.float32)
    key2 = jax.random.normal(kk2, (B2, nk2, d_model2), jnp.float32)
    val2 = jax.random.normal(kv2, (B2, nk2, d_model2), jnp.float32)
    wg2 = jax.random.uniform(kg2, (B2, h2, nq2, nk2), jnp.float32)
    ref2 = reference_forward(q2, key2, val2, wg2, params2,
                             h=h2, d_k=d_k2, d_v=d_v2)
    out2 = multi_head_geometry_attention(q2, key2, val2, wg2, params2,
                                         h=h2, d_k=d_k2, d_v=d_v2,
                                         q_tile=16, head_block=2)
    out2 = jax.block_until_ready(out2)
    assert out2.shape == (B2, nq2, d_model2)
    assert jnp.allclose(out2, ref2, atol=5e-3, rtol=5e-3), "tiled f32 mismatch vs reference"

    print("KERNEL_OK")
</pallas_src>

<mosaic_0001>
module attributes {stable_mosaic.version = 11 : i64} {
  func.func @_mhga_kernel(%arg0: i32, %arg1: i32, %arg2: i32, %arg3: memref<1x8x32xf32, #tpu.memory_space<vmem>>, %arg4: memref<1x4x8x8xf32, #tpu.memory_space<vmem>>, %arg5: memref<1x4x8x8xf32, #tpu.memory_space<vmem>>, %arg6: memref<1x4x8x8xf32, #tpu.memory_space<vmem>>, %arg7: memref<1x32x32xf32, #tpu.memory_space<vmem>>, %arg8: memref<1x1x32xf32, #tpu.memory_space<vmem>>, %arg9: memref<1x32x32xf32, #tpu.memory_space<vmem>>, %arg10: memref<1x32xf32, #tpu.memory_space<vmem>>, %arg11: memref<1x32xf32, #tpu.memory_space<vmem>>, %arg12: memref<1x32xf32, #tpu.memory_space<vmem>>, %arg13: memref<1x8x32xf32, #tpu.memory_space<vmem>>, %arg14: memref<8x32xf32, #tpu.memory_space<vmem>>) attributes {dimension_semantics = [#tpu.dimension_semantics<parallel>, #tpu.dimension_semantics<parallel>, #tpu.dimension_semantics<arbitrary>], iteration_bounds = array<i64: 2, 1, 1>, scalar_prefetch = 0 : i64, scratch_operands = 1 : i64, tpu.core_type = #tpu.core_type<tc>, window_params = [{transform_indices = @transform_0, window_bounds = array<i64: 1, 8, 32>}, {transform_indices = @transform_1, window_bounds = array<i64: 1, 4, 8, 8>}, {transform_indices = @transform_2, window_bounds = array<i64: 1, 4, 8, 8>}, {transform_indices = @transform_3, window_bounds = array<i64: 1, 4, 8, 8>}, {transform_indices = @transform_4, window_bounds = array<i64: 1, 32, 32>}, {transform_indices = @transform_5, window_bounds = array<i64: 1, 1, 32>}, {transform_indices = @transform_6, window_bounds = array<i64: 1, 32, 32>}, {pipeline_mode = #tpu.pipeline_mode<synchronous>, transform_indices = @transform_7, window_bounds = array<i64: 1, 32>}, {pipeline_mode = #tpu.pipeline_mode<synchronous>, transform_indices = @transform_8, window_bounds = array<i64: 1, 32>}, {pipeline_mode = #tpu.pipeline_mode<synchronous>, transform_indices = @transform_9, window_bounds = array<i64: 1, 32>}, {transform_indices = @transform_10, window_bounds = array<i64: 1, 8, 32>}]} {
    %c0_i32 = arith.constant 0 : i32
    %0 = arith.cmpi eq, %arg2, %c0_i32 : i32
    %1 = arith.extui %0 : i1 to i32
    %c0_i32_0 = arith.constant 0 : i32
    %2 = arith.cmpi ne, %1, %c0_i32_0 : i32
    scf.if %2 {
      %cst_84 = arith.constant 0.000000e+00 : f32
      %106 = vector.broadcast %cst_84 : f32 to vector<8x32xf32>
      %c0_85 = arith.constant 0 : index
      %c0_86 = arith.constant 0 : index
      %107 = vector.load %arg14[%c0_85, %c0_86] : memref<8x32xf32, #tpu.memory_space<vmem>>, vector<8x32xf32>
      tpu.vector_store %arg14[%c0_85, %c0_86], %106 {strides = array<i32>} : memref<8x32xf32, #tpu.memory_space<vmem>>, vector<8x32xf32>,
    } else {
    }
    %c0 = arith.constant 0 : index
    %c0_1 = arith.constant 0 : index
    %c0_2 = arith.constant 0 : index
    %3 = vector.load %arg3[%c0, %c0_1, %c0_2] : memref<1x8x32xf32, #tpu.memory_space<vmem>>, vector<1x8x32xf32>
    %4 = vector.shape_cast %3 : vector<1x8x32xf32> to vector<8x32xf32>
    %c0_3 = arith.constant 0 : index
    %c0_4 = arith.constant 0 : index
    %c0_5 = arith.constant 0 : index
    %5 = vector.load %arg7[%c0_3, %c0_4, %c0_5] : memref<1x32x32xf32, #tpu.memory_space<vmem>>, vector<1x32x32xf32>
    %6 = vector.shape_cast %5 : vector<1x32x32xf32> to vector<32x32xf32>
    %cst = arith.constant dense<0.000000e+00> : vector<8x32xf32>
    %7 = tpu.matmul %4, %6, %cst {dimension_numbers = #tpu.dot_dimension_numbers<[1], [0], [0], [1], [0, 0, 1, 1], [], []>} : vector<8x32xf32>, vector<32x32xf32>, vector<8x32xf32> -> vector<8x32xf32>
    %c0_6 = arith.constant 0 : index
    %c0_7 = arith.constant 0 : index
    %c0_8 = arith.constant 0 : index
    %8 = vector.load %arg8[%c0_6, %c0_7, %c0_8] : memref<1x1x32xf32, #tpu.memory_space<vmem>>, vector<1x1x32xf32>
    %9 = vector.shape_cast %8 : vector<1x1x32xf32> to vector<1x32xf32>
    %10 = vector.broadcast %9 : vector<1x32xf32> to vector<8x32xf32>
    %11 = arith.addf %7, %10 : vector<8x32xf32>
    %12 = vector.extract_strided_slice %11 {offsets = [0, 0], sizes = [8, 8], strides = [1, 1]} : vector<8x32xf32> to vector<8x8xf32>
    %c0_9 = arith.constant 0 : index
    %c0_10 = arith.constant 0 : index
    %c0_11 = arith.constant 0 : index
    %c0_12 = arith.constant 0 : index
    %13 = vector.load %arg4[%c0_9, %c0_10, %c0_11, %c0_12] : memref<1x4x8x8xf32, #tpu.memory_space<vmem>>, vector<1x1x8x8xf32>
    %14 = vector.shape_cast %13 : vector<1x1x8x8xf32> to vector<8x8xf32>
    %c0_13 = arith.constant 0 : index
    %c0_14 = arith.constant 0 : index
    %c0_15 = arith.constant 0 : index
    %c0_16 = arith.constant 0 : index
    %15 = vector.load %arg5[%c0_13, %c0_14, %c0_15, %c0_16] : memref<1x4x8x8xf32, #tpu.memory_space<vmem>>, vector<1x1x8x8xf32>
    %16 = vector.shape_cast %15 : vector<1x1x8x8xf32> to vector<8x8xf32>
    %cst_17 = arith.constant dense<0.000000e+00> : vector<8x8xf32>
    %17 = tpu.matmul %12, %14, %cst_17 {dimension_numbers = #tpu.dot_dimension_numbers<[1], [1], [0], [0], [0, 0, 1, 0], [], []>} : vector<8x8xf32>, vector<8x8xf32>, vector<8x8xf32> -> vector<8x8xf32>
    %c0_18 = arith.constant 0 : index
    %c0_19 = arith.constant 0 : index
    %c0_20 = arith.constant 0 : index
    %c0_21 = arith.constant 0 : index
    %18 = vector.load %arg6[%c0_18, %c0_19, %c0_20, %c0_21] : memref<1x4x8x8xf32, #tpu.memory_space<vmem>>, vector<1x1x8x8xf32>
    %19 = vector.shape_cast %18 : vector<1x1x8x8xf32> to vector<8x8xf32>
    %20 = arith.subf %17, %19 : vector<8x8xf32>
    %cst_22 = arith.constant dense<0xFF800000> : vector<8xf32>
    %21 = vector.multi_reduction <maximumf>, %20, %cst_22 [1] : vector<8x8xf32> to vector<8xf32>
    %22 = vector.shape_cast %21 : vector<8xf32> to vector<8x1xf32>
    %23 = vector.broadcast %22 : vector<8x1xf32> to vector<8x8xf32>
    %24 = arith.subf %20, %23 : vector<8x8xf32>
    %25 = math.exp %24 : vector<8x8xf32>
    %cst_23 = arith.constant dense<0.000000e+00> : vector<8xf32>
    %26 = vector.multi_reduction <add>, %25, %cst_23 [1] : vector<8x8xf32> to vector<8xf32>
    %27 = vector.shape_cast %26 : vector<8xf32> to vector<8x1xf32>
    %cst_24 = arith.constant dense<0.000000e+00> : vector<8x8xf32>
    %28 = tpu.matmul %25, %16, %cst_24 {dimension_numbers = #tpu.dot_dimension_numbers<[1], [0], [0], [1], [0, 0, 1, 1], [], []>} : vector<8x8xf32>, vector<8x8xf32>, vector<8x8xf32> -> vector<8x8xf32>
    %cst_25 = arith.constant 1.000000e+00 : f32
    %29 = vector.broadcast %cst_25 : f32 to vector<8x1xf32>
    %30 = arith.divf %29, %27 : vector<8x1xf32>
    %31 = vector.broadcast %30 : vector<8x1xf32> to vector<8x8xf32>
    %32 = arith.mulf %28, %31 : vector<8x8xf32>
    %33 = vector.extract_strided_slice %11 {offsets = [0, 8], sizes = [8, 8], strides = [1, 1]} : vector<8x32xf32> to vector<8x8xf32>
    %c0_26 = arith.constant 0 : index
    %c1 = arith.constant 1 : index
    %c0_27 = arith.constant 0 : index
    %c0_28 = arith.constant 0 : index
    %34 = vector.load %arg4[%c0_26, %c1, %c0_27, %c0_28] : memref<1x4x8x8xf32, #tpu.memory_space<vmem>>, vector<1x1x8x8xf32>
    %35 = vector.shape_cast %34 : vector<1x1x8x8xf32> to vector<8x8xf32>
    %c0_29 = arith.constant 0 : index
    %c1_30 = arith.constant 1 : index
    %c0_31 = arith.constant 0 : index
    %c0_32 = arith.constant 0 : index
    %36 = vector.load %arg5[%c0_29, %c1_30, %c0_31, %c0_32] : memref<1x4x8x8xf32, #tpu.memory_space<vmem>>, vector<1x1x8x8xf32>
    %37 = vector.shape_cast %36 : vector<1x1x8x8xf32> to vector<8x8xf32>
    %cst_33 = arith.constant dense<0.000000e+00> : vector<8x8xf32>
    %38 = tpu.matmul %33, %35, %cst_33 {dimension_numbers = #tpu.dot_dimension_numbers<[1], [1], [0], [0], [0, 0, 1, 0], [], []>} : vector<8x8xf32>, vector<8x8xf32>, vector<8x8xf32> -> vector<8x8xf32>
    %c0_34 = arith.constant 0 : index
    %c1_35 = arith.constant 1 : index
    %c0_36 = arith.constant 0 : index
    %c0_37 = arith.constant 0 : index
    %39 = vector.load %arg6[%c0_34, %c1_35, %c0_36, %c0_37] : memref<1x4x8x8xf32, #tpu.memory_space<vmem>>, vector<1x1x8x8xf32>
    %40 = vector.shape_cast %39 : vector<1x1x8x8xf32> to vector<8x8xf32>
    %41 = arith.subf %38, %40 : vector<8x8xf32>
    %cst_38 = arith.constant dense<0xFF800000> : vector<8xf32>
    %42 = vector.multi_reduction <maximumf>, %41, %cst_38 [1] : vector<8x8xf32> to vector<8xf32>
    %43 = vector.shape_cast %42 : vector<8xf32> to vector<8x1xf32>
    %44 = vector.broadcast %43 : vector<8x1xf32> to vector<8x8xf32>
    %45 = arith.subf %41, %44 : vector<8x8xf32>
    %46 = math.exp %45 : vector<8x8xf32>
    %cst_39 = arith.constant dense<0.000000e+00> : vector<8xf32>
    %47 = vector.multi_reduction <add>, %46, %cst_39 [1] : vector<8x8xf32> to vector<8xf32>
    %48 = vector.shape_cast %47 : vector<8xf32> to vector<8x1xf32>
    %cst_40 = arith.constant dense<0.000000e+00> : vector<8x8xf32>
    %49 = tpu.matmul %46, %37, %cst_40 {dimension_numbers = #tpu.dot_dimension_numbers<[1], [0], [0], [1], [0, 0, 1, 1], [], []>} : vector<8x8xf32>, vector<8x8xf32>, vector<8x8xf32> -> vector<8x8xf32>
    %cst_41 = arith.constant 1.000000e+00 : f32
    %50 = vector.broadcast %cst_41 : f32 to vector<8x1xf32>
    %51 = arith.divf %50, %48 : vector<8x1xf32>
    %52 = vector.broadcast %51 : vector<8x1xf32> to vector<8x8xf32>
    %53 = arith.mulf %49, %52 : vector<8x8xf32>
    %54 = vector.extract_strided_slice %11 {offsets = [0, 16], sizes = [8, 8], strides = [1, 1]} : vector<8x32xf32> to vector<8x8xf32>
    %c0_42 = arith.constant 0 : index
    %c2 = arith.constant 2 : index
    %c0_43 = arith.constant 0 : index
    %c0_44 = arith.constant 0 : index
    %55 = vector.load %arg4[%c0_42, %c2, %c0_43, %c0_44] : memref<1x4x8x8xf32, #tpu.memory_space<vmem>>, vector<1x1x8x8xf32>
    %56 = vector.shape_cast %55 : vector<1x1x8x8xf32> to vector<8x8xf32>
    %c0_45 = arith.constant 0 : index
    %c2_46 = arith.constant 2 : index
    %c0_47 = arith.constant 0 : index
    %c0_48 = arith.constant 0 : index
    %57 = vector.load %arg5[%c0_45, %c2_46, %c0_47, %c0_48] : memref<1x4x8x8xf32, #tpu.memory_space<vmem>>, vector<1x1x8x8xf32>
    %58 = vector.shape_cast %57 : vector<1x1x8x8xf32> to vector<8x8xf32>
    %cst_49 = arith.constant dense<0.000000e+00> : vector<8x8xf32>
    %59 = tpu.matmul %54, %56, %cst_49 {dimension_numbers = #tpu.dot_dimension_numbers<[1], [1], [0], [0], [0, 0, 1, 0], [], []>} : vector<8x8xf32>, vector<8x8xf32>, vector<8x8xf32> -> vector<8x8xf32>
    %c0_50 = arith.constant 0 : index
    %c2_51 = arith.constant 2 : index
    %c0_52 = arith.constant 0 : index
    %c0_53 = arith.constant 0 : index
    %60 = vector.load %arg6[%c0_50, %c2_51, %c0_52, %c0_53] : memref<1x4x8x8xf32, #tpu.memory_space<vmem>>, vector<1x1x8x8xf32>
    %61 = vector.shape_cast %60 : vector<1x1x8x8xf32> to vector<8x8xf32>
    %62 = arith.subf %59, %61 : vector<8x8xf32>
    %cst_54 = arith.constant dense<0xFF800000> : vector<8xf32>
    %63 = vector.multi_reduction <maximumf>, %62, %cst_54 [1] : vector<8x8xf32> to vector<8xf32>
    %64 = vector.shape_cast %63 : vector<8xf32> to vector<8x1xf32>
    %65 = vector.broadcast %64 : vector<8x1xf32> to vector<8x8xf32>
    %66 = arith.subf %62, %65 : vector<8x8xf32>
    %67 = math.exp %66 : vector<8x8xf32>
    %cst_55 = arith.constant dense<0.000000e+00> : vector<8xf32>
    %68 = vector.multi_reduction <add>, %67, %cst_55 [1] : vector<8x8xf32> to vector<8xf32>
    %69 = vector.shape_cast %68 : vector<8xf32> to vector<8x1xf32>
    %cst_56 = arith.constant dense<0.000000e+00> : vector<8x8xf32>
    %70 = tpu.matmul %67, %58, %cst_56 {dimension_numbers = #tpu.dot_dimension_numbers<[1], [0], [0], [1], [0, 0, 1, 1], [], []>} : vector<8x8xf32>, vector<8x8xf32>, vector<8x8xf32> -> vector<8x8xf32>
    %cst_57 = arith.constant 1.000000e+00 : f32
    %71 = vector.broadcast %cst_57 : f32 to vector<8x1xf32>
    %72 = arith.divf %71, %69 : vector<8x1xf32>
    %73 = vector.broadcast %72 : vector<8x1xf32> to vector<8x8xf32>
    %74 = arith.mulf %70, %73 : vector<8x8xf32>
    %75 = vector.extract_strided_slice %11 {offsets = [0, 24], sizes = [8, 8], strides = [1, 1]} : vector<8x32xf32> to vector<8x8xf32>
    %c0_58 = arith.constant 0 : index
    %c3 = arith.constant 3 : index
    %c0_59 = arith.constant 0 : index
    %c0_60 = arith.constant 0 : index
    %76 = vector.load %arg4[%c0_58, %c3, %c0_59, %c0_60] : memref<1x4x8x8xf32, #tpu.memory_space<vmem>>, vector<1x1x8x8xf32>
    %77 = vector.shape_cast %76 : vector<1x1x8x8xf32> to vector<8x8xf32>
    %c0_61 = arith.constant 0 : index
    %c3_62 = arith.constant 3 : index
    %c0_63 = arith.constant 0 : index
    %c0_64 = arith.constant 0 : index
    %78 = vector.load %arg5[%c0_61, %c3_62, %c0_63, %c0_64] : memref<1x4x8x8xf32, #tpu.memory_space<vmem>>, vector<1x1x8x8xf32>
    %79 = vector.shape_cast %78 : vector<1x1x8x8xf32> to vector<8x8xf32>
    %cst_65 = arith.constant dense<0.000000e+00> : vector<8x8xf32>
    %80 = tpu.matmul %75, %77, %cst_65 {dimension_numbers = #tpu.dot_dimension_numbers<[1], [1], [0], [0], [0, 0, 1, 0], [], []>} : vector<8x8xf32>, vector<8x8xf32>, vector<8x8xf32> -> vector<8x8xf32>
    %c0_66 = arith.constant 0 : index
    %c3_67 = arith.constant 3 : index
    %c0_68 = arith.constant 0 : index
    %c0_69 = arith.constant 0 : index
    %81 = vector.load %arg6[%c0_66, %c3_67, %c0_68, %c0_69] : memref<1x4x8x8xf32, #tpu.memory_space<vmem>>, vector<1x1x8x8xf32>
    %82 = vector.shape_cast %81 : vector<1x1x8x8xf32> to vector<8x8xf32>
    %83 = arith.subf %80, %82 : vector<8x8xf32>
    %cst_70 = arith.constant dense<0xFF800000> : vector<8xf32>
    %84 = vector.multi_reduction <maximumf>, %83, %cst_70 [1] : vector<8x8xf32> to vector<8xf32>
    %85 = vector.shape_cast %84 : vector<8xf32> to vector<8x1xf32>
    %86 = vector.broadcast %85 : vector<8x1xf32> to vector<8x8xf32>
    %87 = arith.subf %83, %86 : vector<8x8xf32>
    %88 = math.exp %87 : vector<8x8xf32>
    %cst_71 = arith.constant dense<0.000000e+00> : vector<8xf32>
    %89 = vector.multi_reduction <add>, %88, %cst_71 [1] : vector<8x8xf32> to vector<8xf32>
    %90 = vector.shape_cast %89 : vector<8xf32> to vector<8x1xf32>
    %cst_72 = arith.constant dense<0.000000e+00> : vector<8x8xf32>
    %91 = tpu.matmul %88, %79, %cst_72 {dimension_numbers = #tpu.dot_dimension_numbers<[1], [0], [0], [1], [0, 0, 1, 1], [], []>} : vector<8x8xf32>, vector<8x8xf32>, vector<8x8xf32> -> vector<8x8xf32>
    %cst_73 = arith.constant 1.000000e+00 : f32
    %92 = vector.broadcast %cst_73 : f32 to vector<8x1xf32>
    %93 = arith.divf %92, %90 : vector<8x1xf32>
    %94 = vector.broadcast %93 : vector<8x1xf32> to vector<8x8xf32>
    %95 = arith.mulf %91, %94 : vector<8x8xf32>
    %96 = tpu.concatenate %32, %53, %74, %95 in 1 : vector<8x8xf32>, vector<8x8xf32>, vector<8x8xf32>, vector<8x8xf32> -> vector<8x32xf32>
    %c0_74 = arith.constant 0 : index
    %c0_75 = arith.constant 0 : index
    %97 = vector.load %arg14[%c0_74, %c0_75] : memref<8x32xf32, #tpu.memory_space<vmem>>, vector<8x32xf32>
    %c0_76 = arith.constant 0 : index
    %c0_77 = arith.constant 0 : index
    %c0_78 = arith.constant 0 : index
    %98 = vector.load %arg9[%c0_76, %c0_77, %c0_78] : memref<1x32x32xf32, #tpu.memory_space<vmem>>, vector<1x32x32xf32>
    %99 = vector.shape_cast %98 : vector<1x32x32xf32> to vector<32x32xf32>
    %cst_79 = arith.constant dense<0.000000e+00> : vector<8x32xf32>
    %100 = tpu.matmul %96, %99, %cst_79 {dimension_numbers = #tpu.dot_dimension_numbers<[1], [0], [0], [1], [0, 0, 1, 1], [], []>} : vector<8x32xf32>, vector<32x32xf32>, vector<8x32xf32> -> vector<8x32xf32>
    %101 = arith.addf %97, %100 : vector<8x32xf32>
    %c0_80 = arith.constant 0 : index
    %c0_81 = arith.constant 0 : index
    %102 = vector.load %arg14[%c0_80, %c0_81] : memref<8x32xf32, #tpu.memory_space<vmem>>, vector<8x32xf32>
    tpu.vector_store %arg14[%c0_80, %c0_81], %101 {strides = array<i32>} : memref<8x32xf32, #tpu.memory_space<vmem>>, vector<8x32xf32>,
    %c0_i32_82 = arith.constant 0 : i32
    %103 = arith.cmpi eq, %arg2, %c0_i32_82 : i32
    %104 = arith.extui %103 : i1 to i32
    %c0_i32_83 = arith.constant 0 : i32
    %105 = arith.cmpi ne, %104, %c0_i32_83 : i32
    scf.if %105 {
      %c0_84 = arith.constant 0 : index
      %c0_85 = arith.constant 0 : index
      %106 = vector.load %arg14[%c0_84, %c0_85] : memref<8x32xf32, #tpu.memory_space<vmem>>, vector<8x32xf32>
      %c0_86 = arith.constant 0 : index
      %c0_87 = arith.constant 0 : index
      %107 = vector.load %arg10[%c0_86, %c0_87] : memref<1x32xf32, #tpu.memory_space<vmem>>, vector<1x32xf32>
      %108 = vector.broadcast %107 : vector<1x32xf32> to vector<8x32xf32>
      %109 = arith.addf %106, %108 : vector<8x32xf32>
      %110 = arith.addf %4, %109 : vector<8x32xf32>
      %cst_88 = arith.constant dense<0.000000e+00> : vector<8xf32>
      %111 = vector.multi_reduction <add>, %110, %cst_88 [1] : vector<8x32xf32> to vector<8xf32>
      %112 = vector.shape_cast %111 : vector<8xf32> to vector<8x1xf32>
      %cst_89 = arith.constant 3.200000e+01 : f32
      %113 = vector.broadcast %cst_89 : f32 to vector<8x1xf32>
      %114 = arith.divf %112, %113 : vector<8x1xf32>
      %115 = vector.broadcast %114 : vector<8x1xf32> to vector<8x32xf32>
      %116 = arith.subf %110, %115 : vector<8x32xf32>
      %117 = arith.mulf %116, %116 : vector<8x32xf32>
      %cst_90 = arith.constant dense<0.000000e+00> : vector<8xf32>
      %118 = vector.multi_reduction <add>, %117, %cst_90 [1] : vector<8x32xf32> to vector<8xf32>
      %119 = vector.shape_cast %118 : vector<8xf32> to vector<8x1xf32>
      %cst_91 = arith.constant 3.200000e+01 : f32
      %120 = vector.broadcast %cst_91 : f32 to vector<8x1xf32>
      %121 = arith.divf %119, %120 : vector<8x1xf32>
      %cst_92 = arith.constant 9.99999974E-6 : f32
      %122 = vector.broadcast %cst_92 : f32 to vector<8x1xf32>
      %123 = arith.addf %121, %122 : vector<8x1xf32>
      %124 = math.rsqrt %123 : vector<8x1xf32>
      %125 = vector.broadcast %124 : vector<8x1xf32> to vector<8x32xf32>
      %126 = arith.mulf %116, %125 : vector<8x32xf32>
      %c0_93 = arith.constant 0 : index
      %c0_94 = arith.constant 0 : index
      %127 = vector.load %arg11[%c0_93, %c0_94] : memref<1x32xf32, #tpu.memory_space<vmem>>, vector<1x32xf32>
      %128 = vector.broadcast %127 : vector<1x32xf32> to vector<8x32xf32>
      %129 = arith.mulf %126, %128 : vector<8x32xf32>
      %c0_95 = arith.constant 0 : index
      %c0_96 = arith.constant 0 : index
      %130 = vector.load %arg12[%c0_95, %c0_96] : memref<1x32xf32, #tpu.memory_space<vmem>>, vector<1x32xf32>
      %131 = vector.broadcast %130 : vector<1x32xf32> to vector<8x32xf32>
      %132 = arith.addf %129, %131 : vector<8x32xf32>
      %c0_97 = arith.constant 0 : index
      %c0_98 = arith.constant 0 : index
      %c0_99 = arith.constant 0 : index
      %133 = vector.load %arg13[%c0_97, %c0_98, %c0_99] : memref<1x8x32xf32, #tpu.memory_space<vmem>>, vector<1x8x32xf32>
      %134 = vector.shape_cast %133 : vector<1x8x32xf32> to vector<8x32xf32>
      %135 = vector.shape_cast %132 : vector<8x32xf32> to vector<1x8x32xf32>
      tpu.vector_store %arg13[%c0_97, %c0_98, %c0_99], %135 {strides = array<i32>} : memref<1x8x32xf32, #tpu.memory_space<vmem>>, vector<1x8x32xf32>,
    } else {
    }
    return
  }
  func.func @transform_0(%arg0: i32, %arg1: i32, %arg2: i32) -> (i32, i32, i32) {
    %c0_i32 = arith.constant 0 : i32
    %c0_i32_0 = arith.constant 0 : i32
    return %arg0, %arg1, %c0_i32 : i32, i32, i32
  }
  func.func @transform_1(%arg0: i32, %arg1: i32, %arg2: i32) -> (i32, i32, i32, i32) {
    %c0_i32 = arith.constant 0 : i32
    %c0_i32_0 = arith.constant 0 : i32
    %c0_i32_1 = arith.constant 0 : i32
    return %arg0, %arg2, %c0_i32, %c0_i32_0 : i32, i32, i32, i32
  }
  func.func @transform_2(%arg0: i32, %arg1: i32, %arg2: i32) -> (i32, i32, i32, i32) {
    %c0_i32 = arith.constant 0 : i32
    %c0_i32_0 = arith.constant 0 : i32
    %c0_i32_1 = arith.constant 0 : i32
    return %arg0, %arg2, %c0_i32, %c0_i32_0 : i32, i32, i32, i32
  }
  func.func @transform_3(%arg0: i32, %arg1: i32, %arg2: i32) -> (i32, i32, i32, i32) {
    %c0_i32 = arith.constant 0 : i32
    %c0_i32_0 = arith.constant 0 : i32
    return %arg0, %arg2, %arg1, %c0_i32 : i32, i32, i32, i32
  }
  func.func @transform_4(%arg0: i32, %arg1: i32, %arg2: i32) -> (i32, i32, i32) {
    %c0_i32 = arith.constant 0 : i32
    %c0_i32_0 = arith.constant 0 : i32
    %c0_i32_1 = arith.constant 0 : i32
    return %arg2, %c0_i32, %c0_i32_0 : i32, i32, i32
  }
  func.func @transform_5(%arg0: i32, %arg1: i32, %arg2: i32) -> (i32, i32, i32) {
    %c0_i32 = arith.constant 0 : i32
    %c0_i32_0 = arith.constant 0 : i32
    %c0_i32_1 = arith.constant 0 : i32
    return %arg2, %c0_i32, %c0_i32_0 : i32, i32, i32
  }
  func.func @transform_6(%arg0: i32, %arg1: i32, %arg2: i32) -> (i32, i32, i32) {
    %c0_i32 = arith.constant 0 : i32
    %c0_i32_0 = arith.constant 0 : i32
    %c0_i32_1 = arith.constant 0 : i32
    return %arg2, %c0_i32, %c0_i32_0 : i32, i32, i32
  }
  func.func @transform_7(%arg0: i32, %arg1: i32, %arg2: i32) -> (i32, i32) {
    %c0_i32 = arith.constant 0 : i32
    %c0_i32_0 = arith.constant 0 : i32
    %c0_i32_1 = arith.constant 0 : i32
    return %c0_i32, %c0_i32_0 : i32, i32
  }
  func.func @transform_8(%arg0: i32, %arg1: i32, %arg2: i32) -> (i32, i32) {
    %c0_i32 = arith.constant 0 : i32
    %c0_i32_0 = arith.constant 0 : i32
    %c0_i32_1 = arith.constant 0 : i32
    return %c0_i32, %c0_i32_0 : i32, i32
  }
  func.func @transform_9(%arg0: i32, %arg1: i32, %arg2: i32) -> (i32, i32) {
    %c0_i32 = arith.constant 0 : i32
    %c0_i32_0 = arith.constant 0 : i32
    %c0_i32_1 = arith.constant 0 : i32
    return %c0_i32, %c0_i32_0 : i32, i32
  }
  func.func @transform_10(%arg0: i32, %arg1: i32, %arg2: i32) -> (i32, i32, i32) {
    %c0_i32 = arith.constant 0 : i32
    %c0_i32_0 = arith.constant 0 : i32
    return %arg0, %arg1, %c0_i32 : i32, i32, i32
  }
}

</mosaic_0001>

<llo_original>
// kernel: tpu_custom_call.1
$region0: #{tpu_custom_call.1}
  #allocation0 [shape = 'u32[]', space=smem, size = 0x4, offset = 0x4, fixed_abs, tag = 'smem constant byte address 0x4 - core index']
  #allocation1 [shape = 'u32[144,128]{1,0:T(1,128)}', space=vmem, size = 0x12000, scoped, tag = 'internal scratch']
  #allocation2 [shape = 'f32[8,32]{1,0:T(8,128)}', space=vmem, size = 0x1000, scoped, tag = 'scratch operand']
  %s0 = inlined_call_operand.hbm [shape: f32[2,8,32], index: 0, kind: input, shape index: {}]
  %s1 = inlined_call_operand.hbm [shape: f32[2,4,8,8], index: 1, kind: input, shape index: {}]
  %s2 = inlined_call_operand.hbm [shape: f32[2,4,8,8], index: 2, kind: input, shape index: {}]
  %s3 = inlined_call_operand.hbm [shape: f32[2,4,8,8], index: 3, kind: input, shape index: {}]
  %s4 = inlined_call_operand.hbm [shape: f32[1,32,32], index: 4, kind: input, shape index: {}]
  %s5 = inlined_call_operand.vmem [shape: f32[1,1,32], index: 5, kind: input, shape index: {}]
  %s6 = inlined_call_operand.hbm [shape: f32[1,32,32], index: 6, kind: input, shape index: {}]
  %s7 = inlined_call_operand.vmem [shape: f32[1,32], index: 7, kind: input, shape index: {}]
  %s8 = inlined_call_operand.vmem [shape: f32[1,32], index: 8, kind: input, shape index: {}]
  %s9 = inlined_call_operand.vmem [shape: f32[1,32], index: 9, kind: input, shape index: {}]
  %s10 = inlined_call_operand.hbm [shape: f32[2,8,32], index: 10, kind: output, shape index: {}]
  %s11 = sld [smem:[#allocation0]]
  $region105: #{tpu_custom_call.1} parent=0
    _
  %s13 = ssub.s32 1, %s11
  %s14 = scalar_select 0, %s13, %s11
  $region1: #{tpu_custom_call.1} parent=0
    #allocation3 [shape = 'u8[8192]{0}', space=vmem, size = 0x2000, scoped, tag = 'input window, operand 0']
    #allocation4 [shape = 's32[2]{0}', space=sflag, size = 0x8, scoped, tag = 'scoped memory for tpu_custom_call.1']
    #allocation5 [shape = 's32[2]{0}', space=sflag, size = 0x8, scoped, tag = 'scoped memory for tpu_custom_call.1']
    #allocation6 [shape = 'u8[32768]{0}', space=vmem, size = 0x8000, scoped, tag = 'input window, operand 1']
    #allocation7 [shape = 's32[2]{0}', space=sflag, size = 0x8, scoped, tag = 'scoped memory for tpu_custom_call.1']
    #allocation8 [shape = 'u8[32768]{0}', space=vmem, size = 0x8000, scoped, tag = 'input window, operand 2']
    #allocation9 [shape = 'u8[32768]{0}', space=vmem, size = 0x8000, scoped, tag = 'input window, operand 3']
    #allocation10 [shape = 's32[2]{0}', space=sflag, size = 0x8, scoped, tag = 'scoped memory for tpu_custom_call.1']
    #allocation11 [shape = 'u8[16384]{0}', space=vmem, size = 0x4000, scoped, tag = 'input window, operand 4, single buffered']
    #allocation12 [shape = 'u8[16384]{0}', space=vmem, size = 0x4000, scoped, tag = 'input window, operand 6, single buffered']
    #allocation13 [shape = 's32[1]{0}', space=sflag, size = 0x4, scoped, tag = 'scoped memory for tpu_custom_call.1']
    #allocation14 [shape = 'u8[8192]{0}', space=vmem, size = 0x2000, scoped, tag = 'output window, operand 0']
    %15 = vsyncpa [#allocation4], 0
    %s16 = scalar_lea.sflag [#allocation4], 1
    %17 = vsyncpa %s16, 0
    %18 = vsyncpa [#allocation7], 0
    %s19 = scalar_lea.sflag [#allocation7], 1
    %20 = vsyncpa %s19, 0
    %21 = vsyncpa [#allocation10], 0
    %s22 = scalar_lea.sflag [#allocation10], 1
    %23 = vsyncpa %s22, 0
    %24 = vsyncpa [#allocation13], 0
    %25 = vsyncpa [#allocation5], 0
    %s26 = scalar_lea.sflag [#allocation5], 1
    %27 = vsyncpa %s26, 0
    loop: start=0, step=1, limit=4
    $region2: #{tpu_custom_call.1} parent=1 // loop_pre_header
      _
    $region3: #{tpu_custom_call.1} parent=1 // loop_header
      %s29 = sphi 0, %s33
      %p30 = scmp.ge.s32.totalorder %s29, 4
      %s36 = sphi 0, %s55
      %s37 = sphi 0, %s51
      %s38 = sphi 0, %s47
      %s39 = sphi 0, %s36
      %s40 = sphi 0, %s37
      %s41 = sphi 0, %s38
      %s42 = sphi 0, %s39
      %s43 = sphi 0, %s40
      %s44 = sphi 0, %s41
      %s60 = sphi 0, %s62
      %s63 = sphi 0, %s60
      %s64 = sphi 0, %s63
      %s80 = sphi 0, %s64
      %s88 = sphi 0, %s90
      %s91 = sphi 0, %s88
      %s92 = sphi 0, %s91
      %s108 = sphi 0, %s92
      %s116 = sphi 0, %s118
      %s119 = sphi 0, %s116
      %s120 = sphi 0, %s119
      %s136 = sphi 0, %s120
      %s146 = sphi 0, %s148
      %s149 = sphi 0, %s146
      %s150 = sphi 0, %s149
      %s166 = sphi 0, %s150
      %s172 = sphi 0, %s174
      %s175 = sphi 0, %s172
      %s176 = sphi 0, %s175
      %s192 = sphi 0, %s176
      %s198 = sphi 0, %s200
      %s201 = sphi 0, %s198
      %s202 = sphi 0, %s201
      %s218 = sphi 0, %s202
      %s224 = sphi 0, %s226
      %s227 = sphi 0, %s224
      %s228 = sphi 0, %s227
      %s244 = sphi 0, %s228
      %s248 = sphi 0, %s248
      %s250 = sphi 0, %s248
      %s251 = sphi 0, %s250
      %s265 = sphi 0, %s251
      %s269 = sphi 0, %s269
      %s271 = sphi 0, %s269
      %s272 = sphi 0, %s271
      %s286 = sphi 0, %s272
      %s290 = sphi 0, %s290
      %s292 = sphi 0, %s290
      %s293 = sphi 0, %s292
      %s307 = sphi 0, %s293
      %s315 = sphi 0, %s317
      %s318 = sphi 0, %s315
      %s319 = sphi 0, %s318
      %s335 = sphi 0, %s319
    $region4: #{tpu_custom_call.1} parent=1 // loop_header_branch
      %32 = sbr.rel (%p30) target = $region8
    $region5: #{tpu_custom_call.1} parent=1 // loop_body
      %s34 = ssub.s32 %s29, 1
      %s35 = ssub.s32 %s29, 2
      %s45 = sadd.s32 1, %s38
      %p46 = scmp.ge.s32.totalorder %s45, 1
      %s47 = scalar_select %p46, 0, %s45
      %s48 = sadd.s32 1, %s37
      %s49 = scalar_select %p46, %s48, %s37
      %p50 = scmp.ge.s32.totalorder %s49, 1
      %s51 = scalar_select %p50, 0, %s49
      %s52 = sadd.s32 1, %s36
      %s53 = scalar_select %p50, %s52, %s36
      %p54 = scmp.ge.s32.totalorder %s53, 2
      %s55 = scalar_select %p54, 0, %s53
      %s56 = ssub.s32 %s36, %s55
      %s57 = ssub.s32 %s37, %s51
      %s58 = sor.u32 %s56, %s57
      %p59 = scmp.eq.s32.totalorder %s58, 0
      %s61 = sadd.s32 %s60, 1
      %s62 = scalar_select %p59, %s60, %s61
      %p65 = pneg %p59
      %p66 = scmp.eq.s32.totalorder %s29, 1
      %p67 = por %p65, %p66
      %p68 = scmp.ne.s32.totalorder %s60, %s63
      %p69 = scmp.eq.s32.totalorder %s29, 0
      %p70 = por %p68, %p69
      %p71 = scmp.ne.s32.totalorder %s60, %s63
      %p72 = scmp.eq.s32.totalorder %s34, 1
      %p73 = por %p71, %p72
      %p74 = scmp.ne.s32.totalorder %s63, %s64
      %p75 = scmp.eq.s32.totalorder %s34, 0
      %p76 = por %p74, %p75
      %p77 = scmp.ne.s32.totalorder %s63, %s64
      %p78 = scmp.eq.s32.totalorder %s35, 1
      %p79 = por %p77, %p78
      %p81 = scmp.ne.s32.totalorder %s64, %s80
      %p82 = scmp.eq.s32.totalorder %s35, 0
      %p83 = por %p81, %p82
      %s84 = ssub.s32 %s36, %s55
      %s85 = ssub.s32 %s38, %s47
      %s86 = sor.u32 %s84, %s85
      %p87 = scmp.eq.s32.totalorder %s86, 0
      %s89 = sadd.s32 %s88, 1
      %s90 = scalar_select %p87, %s88, %s89
      %p93 = pneg %p87
      %p94 = scmp.eq.s32.totalorder %s29, 1
      %p95 = por %p93, %p94
      %p96 = scmp.ne.s32.totalorder %s88, %s91
      %p97 = scmp.eq.s32.totalorder %s29, 0
      %p98 = por %p96, %p97
      %p99 = scmp.ne.s32.totalorder %s88, %s91
      %p100 = scmp.eq.s32.totalorder %s34, 1
      %p101 = por %p99, %p100
      %p102 = scmp.ne.s32.totalorder %s91, %s92
      %p103 = scmp.eq.s32.totalorder %s34, 0
      %p104 = por %p102, %p103
      %p105 = scmp.ne.s32.totalorder %s91, %s92
      %p106 = scmp.eq.s32.totalorder %s35, 1
      %p107 = por %p105, %p106
      %p109 = scmp.ne.s32.totalorder %s92, %s108
      %p110 = scmp.eq.s32.totalorder %s35, 0
      %p111 = por %p109, %p110
      %s112 = ssub.s32 %s36, %s55
      %s113 = ssub.s32 %s38, %s47
      %s114 = sor.u32 %s112, %s113
      %p115 = scmp.eq.s32.totalorder %s114, 0
      %s117 = sadd.s32 %s116, 1
      %s118 = scalar_select %p115, %s116, %s117
      %p121 = pneg %p115
      %p122 = scmp.eq.s32.totalorder %s29, 1
      %p123 = por %p121, %p122
      %p124 = scmp.ne.s32.totalorder %s116, %s119
      %p125 = scmp.eq.s32.totalorder %s29, 0
      %p126 = por %p124, %p125
      %p127 = scmp.ne.s32.totalorder %s116, %s119
      %p128 = scmp.eq.s32.totalorder %s34, 1
      %p129 = por %p127, %p128
      %p130 = scmp.ne.s32.totalorder %s119, %s120
      %p131 = scmp.eq.s32.totalorder %s34, 0
      %p132 = por %p130, %p131
      %p133 = scmp.ne.s32.totalorder %s119, %s120
      %p134 = scmp.eq.s32.totalorder %s35, 1
      %p135 = por %p133, %p134
      %p137 = scmp.ne.s32.totalorder %s120, %s136
      %p138 = scmp.eq.s32.totalorder %s35, 0
      %p139 = por %p137, %p138
      %s140 = ssub.s32 %s36, %s55
      %s141 = ssub.s32 %s38, %s47
      %s142 = sor.u32 %s140, %s141
      %s143 = ssub.s32 %s37, %s51
      %s144 = sor.u32 %s142, %s143
      %p145 = scmp.eq.s32.totalorder %s144, 0
      %s147 = sadd.s32 %s146, 1
      %s148 = scalar_select %p145, %s146, %s147
      %p151 = pneg %p145
      %p152 = scmp.eq.s32.totalorder %s29, 1
      %p153 = por %p151, %p152
      %p154 = scmp.ne.s32.totalorder %s146, %s149
      %p155 = scmp.eq.s32.totalorder %s29, 0
      %p156 = por %p154, %p155
      %p157 = scmp.ne.s32.totalorder %s146, %s149
      %p158 = scmp.eq.s32.totalorder %s34, 1
      %p159 = por %p157, %p158
      %p160 = scmp.ne.s32.totalorder %s149, %s150
      %p161 = scmp.eq.s32.totalorder %s34, 0
      %p162 = por %p160, %p161
      %p163 = scmp.ne.s32.totalorder %s149, %s150
      %p164 = scmp.eq.s32.totalorder %s35, 1
      %p165 = por %p163, %p164
      %p167 = scmp.ne.s32.totalorder %s150, %s166
      %p168 = scmp.eq.s32.totalorder %s35, 0
      %p169 = por %p167, %p168
      %s170 = ssub.s32 %s38, %s47
      %p171 = scmp.eq.s32.totalorder %s170, 0
      %s173 = sadd.s32 %s172, 1
      %s174 = scalar_select %p171, %s172, %s173
      %p177 = pneg %p171
      %p178 = scmp.eq.s32.totalorder %s29, 1
      %p179 = por %p177, %p178
      %p180 = scmp.ne.s32.totalorder %s172, %s175
      %p181 = scmp.eq.s32.totalorder %s29, 0
      %p182 = por %p180, %p181
      %p183 = scmp.ne.s32.totalorder %s172, %s175
      %p184 = scmp.eq.s32.totalorder %s34, 1
      %p185 = por %p183, %p184
      %p186 = scmp.ne.s32.totalorder %s175, %s176
      %p187 = scmp.eq.s32.totalorder %s34, 0
      %p188 = por %p186, %p187
      %p189 = scmp.ne.s32.totalorder %s175, %s176
      %p190 = scmp.eq.s32.totalorder %s35, 1
      %p191 = por %p189, %p190
      %p193 = scmp.ne.s32.totalorder %s176, %s192
      %p194 = scmp.eq.s32.totalorder %s35, 0
      %p195 = por %p193, %p194
      %s196 = ssub.s32 %s38, %s47
      %p197 = scmp.eq.s32.totalorder %s196, 0
      %s199 = sadd.s32 %s198, 1
      %s200 = scalar_select %p197, %s198, %s199
      %p203 = pneg %p197
      %p204 = scmp.eq.s32.totalorder %s29, 1
      %p205 = por %p203, %p204
      %p206 = scmp.ne.s32.totalorder %s198, %s201
      %p207 = scmp.eq.s32.totalorder %s29, 0
      %p208 = por %p206, %p207
      %p209 = scmp.ne.s32.totalorder %s198, %s201
      %p210 = scmp.eq.s32.totalorder %s34, 1
      %p211 = por %p209, %p210
      %p212 = scmp.ne.s32.totalorder %s201, %s202
      %p213 = scmp.eq.s32.totalorder %s34, 0
      %p214 = por %p212, %p213
      %p215 = scmp.ne.s32.totalorder %s201, %s202
      %p216 = scmp.eq.s32.totalorder %s35, 1
      %p217 = por %p215, %p216
      %p219 = scmp.ne.s32.totalorder %s202, %s218
      %p220 = scmp.eq.s32.totalorder %s35, 0
      %p221 = por %p219, %p220
      %s222 = ssub.s32 %s38, %s47
      %p223 = scmp.eq.s32.totalorder %s222, 0
      %s225 = sadd.s32 %s224, 1
      %s226 = scalar_select %p223, %s224, %s225
      %p229 = pneg %p223
      %p230 = scmp.eq.s32.totalorder %s29, 1
      %p231 = por %p229, %p230
      %p232 = scmp.ne.s32.totalorder %s224, %s227
      %p233 = scmp.eq.s32.totalorder %s29, 0
      %p234 = por %p232, %p233
      %p235 = scmp.ne.s32.totalorder %s224, %s227
      %p236 = scmp.eq.s32.totalorder %s34, 1
      %p237 = por %p235, %p236
      %p238 = scmp.ne.s32.totalorder %s227, %s228
      %p239 = scmp.eq.s32.totalorder %s34, 0
      %p240 = por %p238, %p239
      %p241 = scmp.ne.s32.totalorder %s227, %s228
      %p242 = scmp.eq.s32.totalorder %s35, 1
      %p243 = por %p241, %p242
      %p245 = scmp.ne.s32.totalorder %s228, %s244
      %p246 = scmp.eq.s32.totalorder %s35, 0
      %p247 = por %p245, %p246
      %s249 = sadd.s32 %s248, 1
      %p252 = scmp.eq.s32.totalorder %s29, 1
      %p253 = scmp.ne.s32.totalorder %s248, %s250
      %p254 = scmp.eq.s32.totalorder %s29, 0
      %p255 = por %p253, %p254
      %p256 = scmp.ne.s32.totalorder %s248, %s250
      %p257 = scmp.eq.s32.totalorder %s34, 1
      %p258 = por %p256, %p257
      %p259 = scmp.ne.s32.totalorder %s250, %s251
      %p260 = scmp.eq.s32.totalorder %s34, 0
      %p261 = por %p259, %p260
      %p262 = scmp.ne.s32.totalorder %s250, %s251
      %p263 = scmp.eq.s32.totalorder %s35, 1
      %p264 = por %p262, %p263
      %p266 = scmp.ne.s32.totalorder %s251, %s265
      %p267 = scmp.eq.s32.totalorder %s35, 0
      %p268 = por %p266, %p267
      %s270 = sadd.s32 %s269, 1
      %p273 = scmp.eq.s32.totalorder %s29, 1
      %p274 = scmp.ne.s32.totalorder %s269, %s271
      %p275 = scmp.eq.s32.totalorder %s29, 0
      %p276 = por %p274, %p275
      %p277 = scmp.ne.s32.totalorder %s269, %s271
      %p278 = scmp.eq.s32.totalorder %s34, 1
      %p279 = por %p277, %p278
      %p280 = scmp.ne.s32.totalorder %s271, %s272
      %p281 = scmp.eq.s32.totalorder %s34, 0
      %p282 = por %p280, %p281
      %p283 = scmp.ne.s32.totalorder %s271, %s272
      %p284 = scmp.eq.s32.totalorder %s35, 1
      %p285 = por %p283, %p284
      %p287 = scmp.ne.s32.totalorder %s272, %s286
      %p288 = scmp.eq.s32.totalorder %s35, 0
      %p289 = por %p287, %p288
      %s291 = sadd.s32 %s290, 1
      %p294 = scmp.eq.s32.totalorder %s29, 1
      %p295 = scmp.ne.s32.totalorder %s290, %s292
      %p296 = scmp.eq.s32.totalorder %s29, 0
      %p297 = por %p295, %p296
      %p298 = scmp.ne.s32.totalorder %s290, %s292
      %p299 = scmp.eq.s32.totalorder %s34, 1
      %p300 = por %p298, %p299
      %p301 = scmp.ne.s32.totalorder %s292, %s293
      %p302 = scmp.eq.s32.totalorder %s34, 0
      %p303 = por %p301, %p302
      %p304 = scmp.ne.s32.totalorder %s292, %s293
      %p305 = scmp.eq.s32.totalorder %s35, 1
      %p306 = por %p304, %p305
      %p308 = scmp.ne.s32.totalorder %s293, %s307
      %p309 = scmp.eq.s32.totalorder %s35, 0
      %p310 = por %p308, %p309
      %s311 = ssub.s32 %s36, %s55
      %s312 = ssub.s32 %s37, %s51
      %s313 = sor.u32 %s311, %s312
      %p314 = scmp.eq.s32.totalorder %s313, 0
      %s316 = sadd.s32 %s315, 1
      %s317 = scalar_select %p314, %s315, %s316
      %p320 = pneg %p314
      %p321 = scmp.eq.s32.totalorder %s29, 1
      %p322 = por %p320, %p321
      %p323 = scmp.ne.s32.totalorder %s315, %s318
      %p324 = scmp.eq.s32.totalorder %s29, 0
      %p325 = por %p323, %p324
      %p326 = scmp.ne.s32.totalorder %s315, %s318
      %p327 = scmp.eq.s32.totalorder %s34, 1
      %p328 = por %p326, %p327
      %p329 = scmp.ne.s32.totalorder %s318, %s319
      %p330 = scmp.eq.s32.totalorder %s34, 0
      %p331 = por %p329, %p330
      %p332 = scmp.ne.s32.totalorder %s318, %s319
      %p333 = scmp.eq.s32.totalorder %s35, 1
      %p334 = por %p332, %p333
      %p336 = scmp.ne.s32.totalorder %s319, %s335
      %p337 = scmp.eq.s32.totalorder %s35, 0
      %p338 = por %p336, %p337
      %p339 = scmp.le.s32.totalorder 1, %s29
      %p340 = scmp.lt.s32.totalorder %s29, 3
      %p341 = pnand %p339, %p340
      %p342 = pneg %p341
      // Predicated region
      $region9: #{tpu_custom_call.1} parent=5 // pred_check
        _
      $region10: #{tpu_custom_call.1} parent=5 // pred_check_branch
        %344 = sbr.rel (%p341) target = $region12
      $region11: #{tpu_custom_call.1} parent=5 // pred_region
        %s345 = ssub.s32 %s29, 1
        // Predicated region
        $region13: #{tpu_custom_call.1} parent=11 // pred_check
          %p346 = pneg %p188
        $region14: #{tpu_custom_call.1} parent=11 // pred_check_branch
          %348 = sbr.rel (%p346) target = $region16
        $region15: #{tpu_custom_call.1} parent=11 // pred_region
          %s350 = ssub.s32 512, 512
          %351 = vsyncadd [#allocation10], %s350
          %s352 = smul.addr %s41, 4
          %s353 = smul.addr %s352, 128
          %s354 = scalar_lea.hbm %s4, %s353
          %s355 = sshll.u32 [#allocation11], 4
          %s356 = int_to_ptr.vmem [resolvable:$true] %s355
          %361 = dma.hbm_to_vmem [thread:$0]  %s354, 512, %s356, [#allocation10], 128, 128, 8
        $region16: #{tpu_custom_call.1} parent=11 // pred_fallthru
          _
        // Predicated region
        $region17: #{tpu_custom_call.1} parent=11 // pred_check
          %p362 = pneg %p214
        $region18: #{tpu_custom_call.1} parent=11 // pred_check_branch
          %364 = sbr.rel (%p362) target = $region20
        $region19: #{tpu_custom_call.1} parent=11 // pred_region
          %p365 = scmp.lt.s32.totalorder %s41, 0
          %s366 = scalar_select %p365, %s41, 0
          %s367 = scalar_lea.vmem %s5, %s366
        $region20: #{tpu_custom_call.1} parent=11 // pred_fallthru
          _
        // Predicated region
        $region21: #{tpu_custom_call.1} parent=11 // pred_check
          %p368 = pneg %p240
        $region22: #{tpu_custom_call.1} parent=11 // pred_check_branch
          %370 = sbr.rel (%p368) target = $region24
        $region23: #{tpu_custom_call.1} parent=11 // pred_region
          %s372 = ssub.s32 512, 512
          %373 = vsyncadd [#allocation13], %s372
          %s374 = smul.addr %s41, 4
          %s375 = smul.addr %s374, 128
          %s376 = scalar_lea.hbm %s6, %s375
          %s377 = sshll.u32 [#allocation12], 4
          %s378 = int_to_ptr.vmem [resolvable:$true] %s377
          %383 = dma.hbm_to_vmem [thread:$0]  %s376, 512, %s378, [#allocation13], 128, 128, 8
        $region24: #{tpu_custom_call.1} parent=11 // pred_fallthru
          _
        // Predicated region
        $region25: #{tpu_custom_call.1} parent=11 // pred_check
          %p384 = pneg %p261
        $region26: #{tpu_custom_call.1} parent=11 // pred_check_branch
          %386 = sbr.rel (%p384) target = $region28
        $region27: #{tpu_custom_call.1} parent=11 // pred_region
          _
        $region28: #{tpu_custom_call.1} parent=11 // pred_fallthru
          _
        // Predicated region
        $region29: #{tpu_custom_call.1} parent=11 // pred_check
          %p387 = pneg %p282
        $region30: #{tpu_custom_call.1} parent=11 // pred_check_branch
          %389 = sbr.rel (%p387) target = $region32
        $region31: #{tpu_custom_call.1} parent=11 // pred_region
          _
        $region32: #{tpu_custom_call.1} parent=11 // pred_fallthru
          _
        // Predicated region
        $region33: #{tpu_custom_call.1} parent=11 // pred_check
          %p390 = pneg %p303
        $region34: #{tpu_custom_call.1} parent=11 // pred_check_branch
          %392 = sbr.rel (%p390) target = $region36
        $region35: #{tpu_custom_call.1} parent=11 // pred_region
          _
        $region36: #{tpu_custom_call.1} parent=11 // pred_fallthru
          _
      $region12: #{tpu_custom_call.1} parent=5 // pred_fallthru
        _
      %p393 = scmp.lt.s32.totalorder %s29, 2
      // Predicated region
      $region37: #{tpu_custom_call.1} parent=5 // pred_check
        %p394 = pneg %p393
      $region38: #{tpu_custom_call.1} parent=5 // pred_check_branch
        %396 = sbr.rel (%p394) target = $region40
      $region39: #{tpu_custom_call.1} parent=5 // pred_region
        // Predicated region
        $region41: #{tpu_custom_call.1} parent=39 // pred_check
          %p397 = pneg %p70
        $region42: #{tpu_custom_call.1} parent=39 // pred_check_branch
          %399 = sbr.rel (%p397) target = $region44
        $region43: #{tpu_custom_call.1} parent=39 // pred_region
          %s400 = sand.u32 %s60, 1
          %s401 = scalar_lea.sflag [#allocation4], %s400
          %s402 = sand.u32 %s60, 1
          %s403 = smul.addr %s402, 8
          %s404 = scalar_lea.vmem [#allocation3], %s403
          %s406 = ssub.s32 128, 128
          %407 = vsyncadd %s401, %s406
          %s408 = sadd.s32 %s37, %s36
          %s409 = smul.addr %s408, 128
          %s410 = scalar_lea.hbm %s0, %s409
          %s412 = sshll.u32 %s404, 4
          %s413 = int_to_ptr.vmem [resolvable:$true] %s412
          %415 = dma.hbm_to_vmem [thread:$0]  %s410, 128, %s413, %s401
        $region44: #{tpu_custom_call.1} parent=39 // pred_fallthru
          _
        // Predicated region
        $region45: #{tpu_custom_call.1} parent=39 // pred_check
          %p416 = pneg %p98
        $region46: #{tpu_custom_call.1} parent=39 // pred_check_branch
          %418 = sbr.rel (%p416) target = $region48
        $region47: #{tpu_custom_call.1} parent=39 // pred_region
          %s419 = sand.u32 %s29, 1
          %s420 = scalar_lea.sflag [#allocation7], %s419
          %s421 = sand.u32 %s88, 1
          %s422 = smul.addr %s421, 32
          %s423 = scalar_lea.vmem [#allocation6], %s422
          %s424 = smul.u32 4, %s38
          %s426 = ssub.s32 512, 512
          %427 = vsyncadd %s420, %s426
          %s428 = smul.addr %s36, 4
          %s429 = sadd.s32 %s424, %s428
          %s430 = smul.addr %s429, 128
          %s431 = scalar_lea.hbm %s1, %s430
          %s432 = sshll.u32 %s423, 4
          %s433 = int_to_ptr.vmem [resolvable:$true] %s432
          %438 = dma.hbm_to_vmem [thread:$0]  %s431, 512, %s433, %s420, 128, 128, 8
        $region48: #{tpu_custom_call.1} parent=39 // pred_fallthru
          _
        // Predicated region
        $region49: #{tpu_custom_call.1} parent=39 // pred_check
          %p439 = pneg %p126
        $region50: #{tpu_custom_call.1} parent=39 // pred_check_branch
          %441 = sbr.rel (%p439) target = $region52
        $region51: #{tpu_custom_call.1} parent=39 // pred_region
          %s442 = sand.u32 %s29, 1
          %s443 = scalar_lea.sflag [#allocation7], %s442
          %s444 = sand.u32 %s116, 1
          %s445 = smul.addr %s444, 32
          %s446 = scalar_lea.vmem [#allocation8], %s445
          %s447 = smul.u32 4, %s38
          %s449 = ssub.s32 512, 512
          %450 = vsyncadd %s443, %s449
          %s451 = smul.addr %s36, 4
          %s452 = sadd.s32 %s447, %s451
          %s453 = smul.addr %s452, 128
          %s454 = scalar_lea.hbm %s2, %s453
          %s455 = sshll.u32 %s446, 4
          %s456 = int_to_ptr.vmem [resolvable:$true] %s455
          %461 = dma.hbm_to_vmem [thread:$0]  %s454, 512, %s456, %s443, 128, 128, 8
        $region52: #{tpu_custom_call.1} parent=39 // pred_fallthru
          _
        // Predicated region
        $region53: #{tpu_custom_call.1} parent=39 // pred_check
          %p462 = pneg %p156
        $region54: #{tpu_custom_call.1} parent=39 // pred_check_branch
          %464 = sbr.rel (%p462) target = $region56
        $region55: #{tpu_custom_call.1} parent=39 // pred_region
          %s465 = sand.u32 %s29, 1
          %s466 = scalar_lea.sflag [#allocation10], %s465
          %s467 = sand.u32 %s146, 1
          %s468 = smul.addr %s467, 32
          %s469 = scalar_lea.vmem [#allocation9], %s468
          %s470 = smul.u32 4, %s38
          %s472 = ssub.s32 512, 512
          %473 = vsyncadd %s466, %s472
          %s474 = sadd.s32 %s37, %s470
          %s475 = smul.addr %s36, 4
          %s476 = sadd.s32 %s474, %s475
          %s477 = smul.addr %s476, 128
          %s478 = scalar_lea.hbm %s3, %s477
          %s479 = sshll.u32 %s469, 4
          %s480 = int_to_ptr.vmem [resolvable:$true] %s479
          %485 = dma.hbm_to_vmem [thread:$0]  %s478, 512, %s480, %s466, 128, 128, 8
        $region56: #{tpu_custom_call.1} parent=39 // pred_fallthru
          _
      $region40: #{tpu_custom_call.1} parent=5 // pred_fallthru
        _
      %p486 = scmp.le.s32.totalorder 1, %s29
      %p487 = scmp.lt.s32.totalorder %s29, 3
      %p488 = pnand %p486, %p487
      %p489 = pneg %p488
      // Predicated region
      $region57: #{tpu_custom_call.1} parent=5 // pred_check
        _
      $region58: #{tpu_custom_call.1} parent=5 // pred_check_branch
        %491 = sbr.rel (%p488) target = $region60
      $region59: #{tpu_custom_call.1} parent=5 // pred_region
        %s492 = ssub.s32 %s29, 1
        %s493 = sand.u32 %s63, 1
        %s494 = scalar_lea.sflag [#allocation4], %s493
        %s495 = sand.u32 %s63, 1
        %s496 = smul.addr %s495, 8
        %s497 = scalar_lea.vmem [#allocation3], %s496
        // Predicated region
        $region61: #{tpu_custom_call.1} parent=59 // pred_check
          %p498 = pneg %p76
        $region62: #{tpu_custom_call.1} parent=59 // pred_check_branch
          %500 = sbr.rel (%p498) target = $region64
        $region63: #{tpu_custom_call.1} parent=59 // pred_region
          %501 = dma.done %s494, 128
        $region64: #{tpu_custom_call.1} parent=59 // pred_fallthru
          _
        %s502 = sand.u32 %s34, 1
        %s503 = scalar_lea.sflag [#allocation7], %s502
        %s504 = sand.u32 %s91, 1
        %s505 = smul.addr %s504, 32
        %s506 = scalar_lea.vmem [#allocation6], %s505
        // Predicated region
        $region65: #{tpu_custom_call.1} parent=59 // pred_check
          %p507 = pneg %p104
        $region66: #{tpu_custom_call.1} parent=59 // pred_check_branch
          %509 = sbr.rel (%p507) target = $region68
        $region67: #{tpu_custom_call.1} parent=59 // pred_region
          %510 = dma.done %s503, 512
        $region68: #{tpu_custom_call.1} parent=59 // pred_fallthru
          _
        %s511 = sand.u32 %s34, 1
        %s512 = scalar_lea.sflag [#allocation7], %s511
        %s513 = sand.u32 %s119, 1
        %s514 = smul.addr %s513, 32
        %s515 = scalar_lea.vmem [#allocation8], %s514
        // Predicated region
        $region69: #{tpu_custom_call.1} parent=59 // pred_check
          %p516 = pneg %p132
        $region70: #{tpu_custom_call.1} parent=59 // pred_check_branch
          %518 = sbr.rel (%p516) target = $region72
        $region71: #{tpu_custom_call.1} parent=59 // pred_region
          %519 = dma.done %s512, 512
        $region72: #{tpu_custom_call.1} parent=59 // pred_fallthru
          _
        %s520 = sand.u32 %s34, 1
        %s521 = scalar_lea.sflag [#allocation10], %s520
        %s522 = sand.u32 %s149, 1
        %s523 = smul.addr %s522, 32
        %s524 = scalar_lea.vmem [#allocation9], %s523
        // Predicated region
        $region73: #{tpu_custom_call.1} parent=59 // pred_check
          %p525 = pneg %p162
        $region74: #{tpu_custom_call.1} parent=59 // pred_check_branch
          %527 = sbr.rel (%p525) target = $region76
        $region75: #{tpu_custom_call.1} parent=59 // pred_region
          %528 = dma.done %s521, 512
        $region76: #{tpu_custom_call.1} parent=59 // pred_fallthru
          _
        // Predicated region
        $region77: #{tpu_custom_call.1} parent=59 // pred_check
          %p529 = pneg %p188
        $region78: #{tpu_custom_call.1} parent=59 // pred_check_branch
          %531 = sbr.rel (%p529) target = $region80
        $region79: #{tpu_custom_call.1} parent=59 // pred_region
          %532 = dma.done [#allocation10], 512
        $region80: #{tpu_custom_call.1} parent=59 // pred_fallthru
          _
        // Predicated region
        $region81: #{tpu_custom_call.1} parent=59 // pred_check
          %p533 = pneg %p240
        $region82: #{tpu_custom_call.1} parent=59 // pred_check_branch
          %535 = sbr.rel (%p533) target = $region84
        $region83: #{tpu_custom_call.1} parent=59 // pred_region
          %536 = dma.done [#allocation13], 512
        $region84: #{tpu_custom_call.1} parent=59 // pred_fallthru
          _
        %s537 = sand.u32 %s63, 1
        %s538 = scalar_lea.sflag [#allocation4], %s537
        %s539 = sand.u32 %s63, 1
        %s540 = smul.addr %s539, 8
        %s541 = scalar_lea.vmem [#allocation3], %s540
        %p542 = pneg %p76
        %p543 = pneg %p73
        %s544 = sand.u32 %s34, 1
        %s545 = scalar_lea.sflag [#allocation7], %s544
        %s546 = sand.u32 %s91, 1
        %s547 = smul.addr %s546, 32
        %s548 = scalar_lea.vmem [#allocation6], %s547
        %p549 = pneg %p104
        %p550 = pneg %p101
        %s551 = sand.u32 %s34, 1
        %s552 = scalar_lea.sflag [#allocation7], %s551
        %s553 = sand.u32 %s119, 1
        %s554 = smul.addr %s553, 32
        %s555 = scalar_lea.vmem [#allocation8], %s554
        %p556 = pneg %p132
        %p557 = pneg %p129
        %s558 = sand.u32 %s34, 1
        %s559 = scalar_lea.sflag [#allocation10], %s558
        %s560 = sand.u32 %s149, 1
        %s561 = smul.addr %s560, 32
        %s562 = scalar_lea.vmem [#allocation9], %s561
        %p563 = pneg %p162
        %p564 = pneg %p159
        %p565 = pneg %p188
        %p566 = pneg %p185
        %p567 = scmp.lt.s32.totalorder %s41, 0
        %s568 = scalar_select %p567, %s41, 0
        %s569 = scalar_lea.vmem %s5, %s568
        %p570 = pneg %p214
        %p571 = pneg %p211
        %p572 = pneg %p240
        %p573 = pneg %p237
        %p574 = pneg %p261
        %p575 = pneg %p258
        %p576 = pneg %p282
        %p577 = pneg %p279
        %p578 = pneg %p303
        %p579 = pneg %p300
        %p580 = pneg %p331
        %p581 = pneg %p328
        %s582 = sand.u32 %s318, 1
        %s583 = scalar_lea.sflag [#allocation5], %s582
        %s584 = sand.u32 %s318, 1
        %s585 = smul.addr %s584, 8
        %s586 = scalar_lea.vmem [#allocation14], %s585
        %s587 = smul.u32 4, %s41
        %s588 = smul.u32 4, %s41
        %s589 = smul.u32 4, %s41
        %p590 = scmp.lt.s32.totalorder %s41, 0
        %s591 = scalar_select %p590, %s41, 0
        %s592 = scalar_lea.vmem %s5, %s591
        %p593 = scmp.eq.s32.totalorder %s41, 0
        // Predicated region
        $region85: #{tpu_custom_call.1} parent=59 // pred_check
          %p594 = pneg %p593
        $region86: #{tpu_custom_call.1} parent=59 // pred_check_branch
          %596 = sbr.rel (%p594) target = $region88
        $region87: #{tpu_custom_call.1} parent=59 // pred_region
          %vm597 = vcmask 261120
          %598 = vst.msk [vmem:[#allocation2] sm:$0xff] %vm597, 0.0
        $region88: #{tpu_custom_call.1} parent=59 // pred_fallthru
          _
        %v599 = vld [vmem:[%s497] sm:$0xff]
        %v600 = vld [vmem:[#allocation11] sm:$0xff]
        %v601 = vld [vmem:[#allocation11 + $0x8] sm:$0xff]
        %v602 = vld [vmem:[#allocation11 + $0x10] sm:$0xff]
        %v603 = vld [vmem:[#allocation11 + $0x18] sm:$0xff]
        %v604 = vld [vmem:[%s592] sm:$0x1]
        %v606 = vlaneseq
        %v607 = vshrl.u32 %v606, 7
        %v608 = vsub.s32 0, %v607
        %v609 = vrot.slane %v604, %v608
        %vm611 = vcmask 261120
        %v613 = vsel %vm611, %v599, 0
        %615 = vmatprep.subr.mxu0 0.0
        %616 = vmatpush1.msra.mxu0 %v600
        %617 = vmatprep.subr.mxu0 0.0
        %618 = vmatpush1.msra.mxu0 %v601
        %619 = vmatprep.subr.mxu0 0.0
        %620 = vmatpush1.msra.mxu0 %v602
        %621 = vmatprep.subr.mxu0 0.0
        %622 = vmatpush1.msra.mxu0 %v603
        %623 = vmatprep.subr.mxu0 0.0
        %624 = vmatpush1.msra.mxu0 0.0
        %625 = vmatprep.subr.mxu0 0.0
        %626 = vmatpush1.msra.mxu0 0.0
        %627 = vmatprep.subr.mxu0 0.0
        %628 = vmatpush1.msra.mxu0 0.0
        %629 = vmatprep.subr.mxu0 0.0
        %630 = vmatpush1.msra.mxu0 0.0
        %631 = vmatprep.subr.mxu0 0.0
        %632 = vmatpush1.msra.mxu0 0.0
        %633 = vmatprep.subr.mxu0 0.0
        %634 = vmatpush1.msra.mxu0 0.0
        %635 = vmatprep.subr.mxu0 0.0
        %636 = vmatpush1.msra.mxu0 0.0
        %637 = vmatprep.subr.mxu0 0.0
        %638 = vmatpush1.msra.mxu0 0.0
        %639 = vmatprep.subr.mxu0 0.0
        %640 = vmatpush1.msra.mxu0 0.0
        %641 = vmatprep.subr.mxu0 0.0
        %642 = vmatpush1.msra.mxu0 0.0
        %643 = vmatprep.subr.mxu0 0.0
        %644 = vmatpush1.msra.mxu0 0.0
        %645 = vmatprep.subr.mxu0 0.0
        %646 = vmatpush1.msra.mxu0 0.0
        %647 = vmatprep.subr.mxu0 0.0
        %648 = vmatpush1.msra.mxu0 0.0
        %649 = vmatprep.subr.mxu0 0.0
        %650 = vmatpush1.msra.mxu0 0.0
        %651 = vmatprep.subr.mxu0 0.0
        %652 = vmatpush1.msra.mxu0 0.0
        %653 = vmatprep.subr.mxu0 0.0
        %654 = vmatpush1.msra.mxu0 0.0
        %655 = vmatprep.subr.mxu0 0.0
        %656 = vmatpush1.msra.mxu0 0.0
        %657 = vmatprep.subr.mxu0 0.0
        %658 = vmatpush1.msra.mxu0 0.0
        %659 = vmatprep.subr.mxu0 0.0
        %660 = vmatpush1.msra.mxu0 0.0
        %661 = vmatprep.subr.mxu0 0.0
        %662 = vmatpush1.msra.mxu0 0.0
        %663 = vmatprep.subr.mxu0 0.0
        %664 = vmatpush1.msra.mxu0 0.0
        %665 = vmatprep.subr.mxu0 0.0
        %666 = vmatpush1.msra.mxu0 0.0
        %667 = vmatprep.subr.mxu0 0.0
        %668 = vmatpush1.msra.mxu0 0.0
        %669 = vmatprep.subr.mxu0 0.0
        %670 = vmatpush1.msra.mxu0 0.0
        %671 = vmatprep.subr.mxu0 0.0
        %672 = vmatpush1.msra.mxu0 0.0
        %673 = vmatprep.subr.mxu0 0.0
        %674 = vmatpush1.msra.mxu0 0.0
        %675 = vmatprep.subr.mxu0 0.0
        %676 = vmatpush1.msra.mxu0 0.0
        %677 = vmatprep.subr.mxu0 0.0
        %678 = vmatpush1.msra.mxu0 0.0
        %679 = vmatprep.mubr.f32.mxu0 0.0
        %680 = vmatmul.mubr.f32.gmra.mrb[0].mxu0 %v613
        %v681 = vpop.f32.mrb[0].mxu0
        %v682 = vadd.f32 %v609, %v681
        %v683 = vpop.f32.mrb[0].mxu0
        %684 = vdwg.mxu0
        %v685 = vld [vmem:[%s506] sm:$0xff]
        %v686 = vld [vmem:[%s515] sm:$0xff]
        %vm687 = vcmask 64512
        %v689 = vsel %vm687, %v682, 0
        %v692 = vsel %vm687, %v685, 0
        %694 = vmatprep.subr.mxu0 0.0
        %695 = vmatpush1.xpose.msra.mxu0 %v692
        %696 = vmatprep.subr.mxu0 0.0
        %697 = vmatpush1.xpose.msra.mxu0 0.0
        %698 = vmatprep.subr.mxu0 0.0
        %699 = vmatpush1.xpose.msra.mxu0 0.0
        %700 = vmatprep.subr.mxu0 0.0
        %701 = vmatpush1.xpose.msra.mxu0 0.0
        %702 = vmatprep.subr.mxu0 0.0
        %703 = vmatpush1.xpose.msra.mxu0 0.0
        %704 = vmatprep.subr.mxu0 0.0
        %705 = vmatpush1.xpose.msra.mxu0 0.0
        %706 = vmatprep.subr.mxu0 0.0
        %707 = vmatpush1.xpose.msra.mxu0 0.0
        %708 = vmatprep.subr.mxu0 0.0
        %709 = vmatpush1.xpose.msra.mxu0 0.0
        %710 = vmatprep.subr.mxu0 0.0
        %711 = vmatpush1.xpose.msra.mxu0 0.0
        %712 = vmatprep.subr.mxu0 0.0
        %713 = vmatpush1.xpose.msra.mxu0 0.0
        %714 = vmatprep.subr.mxu0 0.0
        %715 = vmatpush1.xpose.msra.mxu0 0.0
        %716 = vmatprep.subr.mxu0 0.0
        %717 = vmatpush1.xpose.msra.mxu0 0.0
        %718 = vmatprep.subr.mxu0 0.0
        %719 = vmatpush1.xpose.msra.mxu0 0.0
        %720 = vmatprep.subr.mxu0 0.0
        %721 = vmatpush1.xpose.msra.mxu0 0.0
        %722 = vmatprep.subr.mxu0 0.0
        %723 = vmatpush1.xpose.msra.mxu0 0.0
        %724 = vmatprep.subr.mxu0 0.0
        %725 = vmatpush1.xpose.msra.mxu0 0.0
        %726 = vmatprep.subr.mxu0 0.0
        %727 = vmatpush1.xpose.msra.mxu0 0.0
        %728 = vmatprep.subr.mxu0 0.0
        %729 = vmatpush1.xpose.msra.mxu0 0.0
        %730 = vmatprep.subr.mxu0 0.0
        %731 = vmatpush1.xpose.msra.mxu0 0.0
        %732 = vmatprep.subr.mxu0 0.0
        %733 = vmatpush1.xpose.msra.mxu0 0.0
        %734 = vmatprep.subr.mxu0 0.0
        %735 = vmatpush1.xpose.msra.mxu0 0.0
        %736 = vmatprep.subr.mxu0 0.0
        %737 = vmatpush1.xpose.msra.mxu0 0.0
        %738 = vmatprep.subr.mxu0 0.0
        %739 = vmatpush1.xpose.msra.mxu0 0.0
        %740 = vmatprep.subr.mxu0 0.0
        %741 = vmatpush1.xpose.msra.mxu0 0.0
        %742 = vmatprep.subr.mxu0 0.0
        %743 = vmatpush1.xpose.msra.mxu0 0.0
        %744 = vmatprep.subr.mxu0 0.0
        %745 = vmatpush1.xpose.msra.mxu0 0.0
        %746 = vmatprep.subr.mxu0 0.0
        %747 = vmatpush1.xpose.msra.mxu0 0.0
        %748 = vmatprep.subr.mxu0 0.0
        %749 = vmatpush1.xpose.msra.mxu0 0.0
        %750 = vmatprep.subr.mxu0 0.0
        %751 = vmatpush1.xpose.msra.mxu0 0.0
        %752 = vmatprep.subr.mxu0 0.0
        %753 = vmatpush1.xpose.msra.mxu0 0.0
        %754 = vmatprep.subr.mxu0 0.0
        %755 = vmatpush1.xpose.msra.mxu0 0.0
        %756 = vmatprep.subr.mxu0 0.0
        %757 = vmatpush1.xpose.msra.mxu0 0.0
        %758 = vmatprep.mubr.f32.mxu0 0.0
        %759 = vmatmul.mubr.f32.gmra.mrb[0].mxu0 %v689
        %v760 = vpop.f32.mrb[0].mxu0
        %v761 = vadd.f32 0.0, %v760
        %v762 = vpop.f32.mrb[0].mxu0
        %763 = vdwg.mxu0
        %v764 = vld [vmem:[%s524] sm:$0xff]
        %v765 = vsub.f32 %v761, %v764
        %v766 = vsel %vm687, %v765, -inf
        %767 = vmax.xlane.f32.xlu0 %v766
        %v768 = vpop.xlane.xlu0 %767
        %v769 = vsub.f32 %v765, %v768
        %v770 = vmul.f32 %v769, 1.442695
        %v771 = vpow.pop %v770
        %v772 = vsel %vm687, %v771, 0.0
        %773 = vadd.xlane.f32.xlu0 %v772
        %v774 = vpop.xlane.xlu0 %773
        %v776 = vsel %vm687, %v771, 0
        %778 = vmatprep.subr.mxu0 0.0
        %779 = vmatpush1.msra.mxu0 %v686
        %780 = vmatprep.subr.mxu0 0.0
        %781 = vmatpush1.msra.mxu0 0.0
        %782 = vmatprep.subr.mxu0 0.0
        %783 = vmatpush1.msra.mxu0 0.0
        %784 = vmatprep.subr.mxu0 0.0
        %785 = vmatpush1.msra.mxu0 0.0
        %786 = vmatprep.subr.mxu0 0.0
        %787 = vmatpush1.msra.mxu0 0.0
        %788 = vmatprep.subr.mxu0 0.0
        %789 = vmatpush1.msra.mxu0 0.0
        %790 = vmatprep.subr.mxu0 0.0
        %791 = vmatpush1.msra.mxu0 0.0
        %792 = vmatprep.subr.mxu0 0.0
        %793 = vmatpush1.msra.mxu0 0.0
        %794 = vmatprep.subr.mxu0 0.0
        %795 = vmatpush1.msra.mxu0 0.0
        %796 = vmatprep.subr.mxu0 0.0
        %797 = vmatpush1.msra.mxu0 0.0
        %798 = vmatprep.subr.mxu0 0.0
        %799 = vmatpush1.msra.mxu0 0.0
        %800 = vmatprep.subr.mxu0 0.0
        %801 = vmatpush1.msra.mxu0 0.0
        %802 = vmatprep.subr.mxu0 0.0
        %803 = vmatpush1.msra.mxu0 0.0
        %804 = vmatprep.subr.mxu0 0.0
        %805 = vmatpush1.msra.mxu0 0.0
        %806 = vmatprep.subr.mxu0 0.0
        %807 = vmatpush1.msra.mxu0 0.0
        %808 = vmatprep.subr.mxu0 0.0
        %809 = vmatpush1.msra.mxu0 0.0
        %810 = vmatprep.subr.mxu0 0.0
        %811 = vmatpush1.msra.mxu0 0.0
        %812 = vmatprep.subr.mxu0 0.0
        %813 = vmatpush1.msra.mxu0 0.0
        %814 = vmatprep.subr.mxu0 0.0
        %815 = vmatpush1.msra.mxu0 0.0
        %816 = vmatprep.subr.mxu0 0.0
        %817 = vmatpush1.msra.mxu0 0.0
        %818 = vmatprep.subr.mxu0 0.0
        %819 = vmatpush1.msra.mxu0 0.0
        %820 = vmatprep.subr.mxu0 0.0
        %821 = vmatpush1.msra.mxu0 0.0
        %822 = vmatprep.subr.mxu0 0.0
        %823 = vmatpush1.msra.mxu0 0.0
        %824 = vmatprep.subr.mxu0 0.0
        %825 = vmatpush1.msra.mxu0 0.0
        %826 = vmatprep.subr.mxu0 0.0
        %827 = vmatpush1.msra.mxu0 0.0
        %828 = vmatprep.subr.mxu0 0.0
        %829 = vmatpush1.msra.mxu0 0.0
        %830 = vmatprep.subr.mxu0 0.0
        %831 = vmatpush1.msra.mxu0 0.0
        %832 = vmatprep.subr.mxu0 0.0
        %833 = vmatpush1.msra.mxu0 0.0
        %834 = vmatprep.subr.mxu0 0.0
        %835 = vmatpush1.msra.mxu0 0.0
        %836 = vmatprep.subr.mxu0 0.0
        %837 = vmatpush1.msra.mxu0 0.0
        %838 = vmatprep.subr.mxu0 0.0
        %839 = vmatpush1.msra.mxu0 0.0
        %840 = vmatprep.subr.mxu0 0.0
        %841 = vmatpush1.msra.mxu0 0.0
        %842 = vmatprep.mubr.f32.mxu0 0.0
        %843 = vmatmul.mubr.f32.gmra.mrb[0].mxu0 %v776
        %v844 = vpop.f32.mrb[0].mxu0
        %v845 = vadd.f32 0.0, %v844
        %v846 = vpop.f32.mrb[0].mxu0
        %847 = vdwg.mxu0
        %v848 = vrcp.pop %v774
        %v849 = vmul.f32 1.0, %v848
        %v850 = vmul.f32 %v845, %v849
        %s851 = scalar_lea.vmem %s506, 8 [#allocation6]
        %v852 = vld [vmem:[%s851] sm:$0xff]
        %s853 = scalar_lea.vmem %s515, 8 [#allocation8]
        %v854 = vld [vmem:[%s853] sm:$0xff]
        %855 = vrot.lane.b32.xlu0 %v682, 120
        %v856 = vpop.permute.xlu0 %855
        %v857 = vsel %vm687, %v856, 0
        %v860 = vsel %vm687, %v852, 0
        %862 = vmatprep.subr.mxu0 0.0
        %863 = vmatpush1.xpose.msra.mxu0 %v860
        %864 = vmatprep.subr.mxu0 0.0
        %865 = vmatpush1.xpose.msra.mxu0 0.0
        %866 = vmatprep.subr.mxu0 0.0
        %867 = vmatpush1.xpose.msra.mxu0 0.0
        %868 = vmatprep.subr.mxu0 0.0
        %869 = vmatpush1.xpose.msra.mxu0 0.0
        %870 = vmatprep.subr.mxu0 0.0
        %871 = vmatpush1.xpose.msra.mxu0 0.0
        %872 = vmatprep.subr.mxu0 0.0
        %873 = vmatpush1.xpose.msra.mxu0 0.0
        %874 = vmatprep.subr.mxu0 0.0
        %875 = vmatpush1.xpose.msra.mxu0 0.0
        %876 = vmatprep.subr.mxu0 0.0
        %877 = vmatpush1.xpose.msra.mxu0 0.0
        %878 = vmatprep.subr.mxu0 0.0
        %879 = vmatpush1.xpose.msra.mxu0 0.0
        %880 = vmatprep.subr.mxu0 0.0
        %881 = vmatpush1.xpose.msra.mxu0 0.0
        %882 = vmatprep.subr.mxu0 0.0
        %883 = vmatpush1.xpose.msra.mxu0 0.0
        %884 = vmatprep.subr.mxu0 0.0
        %885 = vmatpush1.xpose.msra.mxu0 0.0
        %886 = vmatprep.subr.mxu0 0.0
        %887 = vmatpush1.xpose.msra.mxu0 0.0
        %888 = vmatprep.subr.mxu0 0.0
        %889 = vmatpush1.xpose.msra.mxu0 0.0
        %890 = vmatprep.subr.mxu0 0.0
        %891 = vmatpush1.xpose.msra.mxu0 0.0
        %892 = vmatprep.subr.mxu0 0.0
        %893 = vmatpush1.xpose.msra.mxu0 0.0
        %894 = vmatprep.subr.mxu0 0.0
        %895 = vmatpush1.xpose.msra.mxu0 0.0
        %896 = vmatprep.subr.mxu0 0.0
        %897 = vmatpush1.xpose.msra.mxu0 0.0
        %898 = vmatprep.subr.mxu0 0.0
        %899 = vmatpush1.xpose.msra.mxu0 0.0
        %900 = vmatprep.subr.mxu0 0.0
        %901 = vmatpush1.xpose.msra.mxu0 0.0
        %902 = vmatprep.subr.mxu0 0.0
        %903 = vmatpush1.xpose.msra.mxu0 0.0
        %904 = vmatprep.subr.mxu0 0.0
        %905 = vmatpush1.xpose.msra.mxu0 0.0
        %906 = vmatprep.subr.mxu0 0.0
        %907 = vmatpush1.xpose.msra.mxu0 0.0
        %908 = vmatprep.subr.mxu0 0.0
        %909 = vmatpush1.xpose.msra.mxu0 0.0
        %910 = vmatprep.subr.mxu0 0.0
        %911 = vmatpush1.xpose.msra.mxu0 0.0
        %912 = vmatprep.subr.mxu0 0.0
        %913 = vmatpush1.xpose.msra.mxu0 0.0
        %914 = vmatprep.subr.mxu0 0.0
        %915 = vmatpush1.xpose.msra.mxu0 0.0
        %916 = vmatprep.subr.mxu0 0.0
        %917 = vmatpush1.xpose.msra.mxu0 0.0
        %918 = vmatprep.subr.mxu0 0.0
        %919 = vmatpush1.xpose.msra.mxu0 0.0
        %920 = vmatprep.subr.mxu0 0.0
        %921 = vmatpush1.xpose.msra.mxu0 0.0
        %922 = vmatprep.subr.mxu0 0.0
        %923 = vmatpush1.xpose.msra.mxu0 0.0
        %924 = vmatprep.subr.mxu0 0.0
        %925 = vmatpush1.xpose.msra.mxu0 0.0
        %926 = vmatprep.mubr.f32.mxu0 0.0
        %927 = vmatmul.mubr.f32.gmra.mrb[0].mxu0 %v857
        %v928 = vpop.f32.mrb[0].mxu0
        %v929 = vadd.f32 0.0, %v928
        %v930 = vpop.f32.mrb[0].mxu0
        %931 = vdwg.mxu0
        %s932 = scalar_lea.vmem %s524, 8 [#allocation9]
        %v933 = vld [vmem:[%s932] sm:$0xff]
        %v934 = vsub.f32 %v929, %v933
        %v935 = vsel %vm687, %v934, -inf
        %936 = vmax.xlane.f32.xlu0 %v935
        %v937 = vpop.xlane.xlu0 %936
        %v938 = vsub.f32 %v934, %v937
        %v939 = vmul.f32 %v938, 1.442695
        %v940 = vpow.pop %v939
        %v941 = vsel %vm687, %v940, 0.0
        %942 = vadd.xlane.f32.xlu0 %v941
        %v943 = vpop.xlane.xlu0 %942
        %v945 = vsel %vm687, %v940, 0
        %947 = vmatprep.subr.mxu0 0.0
        %948 = vmatpush1.msra.mxu0 %v854
        %949 = vmatprep.subr.mxu0 0.0
        %950 = vmatpush1.msra.mxu0 0.0
        %951 = vmatprep.subr.mxu0 0.0
        %952 = vmatpush1.msra.mxu0 0.0
        %953 = vmatprep.subr.mxu0 0.0
        %954 = vmatpush1.msra.mxu0 0.0
        %955 = vmatprep.subr.mxu0 0.0
        %956 = vmatpush1.msra.mxu0 0.0
        %957 = vmatprep.subr.mxu0 0.0
        %958 = vmatpush1.msra.mxu0 0.0
        %959 = vmatprep.subr.mxu0 0.0
        %960 = vmatpush1.msra.mxu0 0.0
        %961 = vmatprep.subr.mxu0 0.0
        %962 = vmatpush1.msra.mxu0 0.0
        %963 = vmatprep.subr.mxu0 0.0
        %964 = vmatpush1.msra.mxu0 0.0
        %965 = vmatprep.subr.mxu0 0.0
        %966 = vmatpush1.msra.mxu0 0.0
        %967 = vmatprep.subr.mxu0 0.0
        %968 = vmatpush1.msra.mxu0 0.0
        %969 = vmatprep.subr.mxu0 0.0
        %970 = vmatpush1.msra.mxu0 0.0
        %971 = vmatprep.subr.mxu0 0.0
        %972 = vmatpush1.msra.mxu0 0.0
        %973 = vmatprep.subr.mxu0 0.0
        %974 = vmatpush1.msra.mxu0 0.0
        %975 = vmatprep.subr.mxu0 0.0
        %976 = vmatpush1.msra.mxu0 0.0
        %977 = vmatprep.subr.mxu0 0.0
        %978 = vmatpush1.msra.mxu0 0.0
        %979 = vmatprep.subr.mxu0 0.0
        %980 = vmatpush1.msra.mxu0 0.0
        %981 = vmatprep.subr.mxu0 0.0
        %982 = vmatpush1.msra.mxu0 0.0
        %983 = vmatprep.subr.mxu0 0.0
        %984 = vmatpush1.msra.mxu0 0.0
        %985 = vmatprep.subr.mxu0 0.0
        %986 = vmatpush1.msra.mxu0 0.0
        %987 = vmatprep.subr.mxu0 0.0
        %988 = vmatpush1.msra.mxu0 0.0
        %989 = vmatprep.subr.mxu0 0.0
        %990 = vmatpush1.msra.mxu0 0.0
        %991 = vmatprep.subr.mxu0 0.0
        %992 = vmatpush1.msra.mxu0 0.0
        %993 = vmatprep.subr.mxu0 0.0
        %994 = vmatpush1.msra.mxu0 0.0
        %995 = vmatprep.subr.mxu0 0.0
        %996 = vmatpush1.msra.mxu0 0.0
        %997 = vmatprep.subr.mxu0 0.0
        %998 = vmatpush1.msra.mxu0 0.0
        %999 = vmatprep.subr.mxu0 0.0
        %1000 = vmatpush1.msra.mxu0 0.0
        %1001 = vmatprep.subr.mxu0 0.0
        %1002 = vmatpush1.msra.mxu0 0.0
        %1003 = vmatprep.subr.mxu0 0.0
        %1004 = vmatpush1.msra.mxu0 0.0
        %1005 = vmatprep.subr.mxu0 0.0
        %1006 = vmatpush1.msra.mxu0 0.0
        %1007 = vmatprep.subr.mxu0 0.0
        %1008 = vmatpush1.msra.mxu0 0.0
        %1009 = vmatprep.subr.mxu0 0.0
        %1010 = vmatpush1.msra.mxu0 0.0
        %1011 = vmatprep.mubr.f32.mxu0 0.0
        %1012 = vmatmul.mubr.f32.gmra.mrb[0].mxu0 %v945
        %v1013 = vpop.f32.mrb[0].mxu0
        %v1014 = vadd.f32 0.0, %v1013
        %v1015 = vpop.f32.mrb[0].mxu0
        %1016 = vdwg.mxu0
        %v1017 = vrcp.pop %v943
        %v1018 = vmul.f32 1.0, %v1017
        %v1019 = vmul.f32 %v1014, %v1018
        %s1020 = scalar_lea.vmem %s506, 16 [#allocation6]
        %v1021 = vld [vmem:[%s1020] sm:$0xff]
        %s1022 = scalar_lea.vmem %s515, 16 [#allocation8]
        %v1023 = vld [vmem:[%s1022] sm:$0xff]
        %1024 = vrot.lane.b32.xlu0 %v682, 112
        %v1025 = vpop.permute.xlu0 %1024
        %v1026 = vsel %vm687, %v1025, 0
        %v1029 = vsel %vm687, %v1021, 0
        %1031 = vmatprep.subr.mxu0 0.0
        %1032 = vmatpush1.xpose.msra.mxu0 %v1029
        %1033 = vmatprep.subr.mxu0 0.0
        %1034 = vmatpush1.xpose.msra.mxu0 0.0
        %1035 = vmatprep.subr.mxu0 0.0
        %1036 = vmatpush1.xpose.msra.mxu0 0.0
        %1037 = vmatprep.subr.mxu0 0.0
        %1038 = vmatpush1.xpose.msra.mxu0 0.0
        %1039 = vmatprep.subr.mxu0 0.0
        %1040 = vmatpush1.xpose.msra.mxu0 0.0
        %1041 = vmatprep.subr.mxu0 0.0
        %1042 = vmatpush1.xpose.msra.mxu0 0.0
        %1043 = vmatprep.subr.mxu0 0.0
        %1044 = vmatpush1.xpose.msra.mxu0 0.0
        %1045 = vmatprep.subr.mxu0 0.0
        %1046 = vmatpush1.xpose.msra.mxu0 0.0
        %1047 = vmatprep.subr.mxu0 0.0
        %1048 = vmatpush1.xpose.msra.mxu0 0.0
        %1049 = vmatprep.subr.mxu0 0.0
        %1050 = vmatpush1.xpose.msra.mxu0 0.0
        %1051 = vmatprep.subr.mxu0 0.0
        %1052 = vmatpush1.xpose.msra.mxu0 0.0
        %1053 = vmatprep.subr.mxu0 0.0
        %1054 = vmatpush1.xpose.msra.mxu0 0.0
        %1055 = vmatprep.subr.mxu0 0.0
        %1056 = vmatpush1.xpose.msra.mxu0 0.0
        %1057 = vmatprep.subr.mxu0 0.0
        %1058 = vmatpush1.xpose.msra.mxu0 0.0
        %1059 = vmatprep.subr.mxu0 0.0
        %1060 = vmatpush1.xpose.msra.mxu0 0.0
        %1061 = vmatprep.subr.mxu0 0.0
        %1062 = vmatpush1.xpose.msra.mxu0 0.0
        %1063 = vmatprep.subr.mxu0 0.0
        %1064 = vmatpush1.xpose.msra.mxu0 0.0
        %1065 = vmatprep.subr.mxu0 0.0
        %1066 = vmatpush1.xpose.msra.mxu0 0.0
        %1067 = vmatprep.subr.mxu0 0.0
        %1068 = vmatpush1.xpose.msra.mxu0 0.0
        %1069 = vmatprep.subr.mxu0 0.0
        %1070 = vmatpush1.xpose.msra.mxu0 0.0
        %1071 = vmatprep.subr.mxu0 0.0
        %1072 = vmatpush1.xpose.msra.mxu0 0.0
        %1073 = vmatprep.subr.mxu0 0.0
        %1074 = vmatpush1.xpose.msra.mxu0 0.0
        %1075 = vmatprep.subr.mxu0 0.0
        %1076 = vmatpush1.xpose.msra.mxu0 0.0
        %1077 = vmatprep.subr.mxu0 0.0
        %1078 = vmatpush1.xpose.msra.mxu0 0.0
        %1079 = vmatprep.subr.mxu0 0.0
        %1080 = vmatpush1.xpose.msra.mxu0 0.0
        %1081 = vmatprep.subr.mxu0 0.0
        %1082 = vmatpush1.xpose.msra.mxu0 0.0
        %1083 = vmatprep.subr.mxu0 0.0
        %1084 = vmatpush1.xpose.msra.mxu0 0.0
        %1085 = vmatprep.subr.mxu0 0.0
        %1086 = vmatpush1.xpose.msra.mxu0 0.0
        %1087 = vmatprep.subr.mxu0 0.0
        %1088 = vmatpush1.xpose.msra.mxu0 0.0
        %1089 = vmatprep.subr.mxu0 0.0
        %1090 = vmatpush1.xpose.msra.mxu0 0.0
        %1091 = vmatprep.subr.mxu0 0.0
        %1092 = vmatpush1.xpose.msra.mxu0 0.0
        %1093 = vmatprep.subr.mxu0 0.0
        %1094 = vmatpush1.xpose.msra.mxu0 0.0
        %1095 = vmatprep.mubr.f32.mxu0 0.0
        %1096 = vmatmul.mubr.f32.gmra.mrb[0].mxu0 %v1026
        %v1097 = vpop.f32.mrb[0].mxu0
        %v1098 = vadd.f32 0.0, %v1097
        %v1099 = vpop.f32.mrb[0].mxu0
        %1100 = vdwg.mxu0
        %s1101 = scalar_lea.vmem %s524, 16 [#allocation9]
        %v1102 = vld [vmem:[%s1101] sm:$0xff]
        %v1103 = vsub.f32 %v1098, %v1102
        %v1104 = vsel %vm687, %v1103, -inf
        %1105 = vmax.xlane.f32.xlu0 %v1104
        %v1106 = vpop.xlane.xlu0 %1105
        %v1107 = vsub.f32 %v1103, %v1106
        %v1108 = vmul.f32 %v1107, 1.442695
        %v1109 = vpow.pop %v1108
        %v1110 = vsel %vm687, %v1109, 0.0
        %1111 = vadd.xlane.f32.xlu0 %v1110
        %v1112 = vpop.xlane.xlu0 %1111
        %v1114 = vsel %vm687, %v1109, 0
        %1116 = vmatprep.subr.mxu0 0.0
        %1117 = vmatpush1.msra.mxu0 %v1023
        %1118 = vmatprep.subr.mxu0 0.0
        %1119 = vmatpush1.msra.mxu0 0.0
        %1120 = vmatprep.subr.mxu0 0.0
        %1121 = vmatpush1.msra.mxu0 0.0
        %1122 = vmatprep.subr.mxu0 0.0
        %1123 = vmatpush1.msra.mxu0 0.0
        %1124 = vmatprep.subr.mxu0 0.0
        %1125 = vmatpush1.msra.mxu0 0.0
        %1126 = vmatprep.subr.mxu0 0.0
        %1127 = vmatpush1.msra.mxu0 0.0
        %1128 = vmatprep.subr.mxu0 0.0
        %1129 = vmatpush1.msra.mxu0 0.0
        %1130 = vmatprep.subr.mxu0 0.0
        %1131 = vmatpush1.msra.mxu0 0.0
        %1132 = vmatprep.subr.mxu0 0.0
        %1133 = vmatpush1.msra.mxu0 0.0
        %1134 = vmatprep.subr.mxu0 0.0
        %1135 = vmatpush1.msra.mxu0 0.0
        %1136 = vmatprep.subr.mxu0 0.0
        %1137 = vmatpush1.msra.mxu0 0.0
        %1138 = vmatprep.subr.mxu0 0.0
        %1139 = vmatpush1.msra.mxu0 0.0
        %1140 = vmatprep.subr.mxu0 0.0
        %1141 = vmatpush1.msra.mxu0 0.0
        %1142 = vmatprep.subr.mxu0 0.0
        %1143 = vmatpush1.msra.mxu0 0.0
        %1144 = vmatprep.subr.mxu0 0.0
        %1145 = vmatpush1.msra.mxu0 0.0
        %1146 = vmatprep.subr.mxu0 0.0
        %1147 = vmatpush1.msra.mxu0 0.0
        %1148 = vmatprep.subr.mxu0 0.0
        %1149 = vmatpush1.msra.mxu0 0.0
        %1150 = vmatprep.subr.mxu0 0.0
        %1151 = vmatpush1.msra.mxu0 0.0
        %1152 = vmatprep.subr.mxu0 0.0
        %1153 = vmatpush1.msra.mxu0 0.0
        %1154 = vmatprep.subr.mxu0 0.0
        %1155 = vmatpush1.msra.mxu0 0.0
        %1156 = vmatprep.subr.mxu0 0.0
        %1157 = vmatpush1.msra.mxu0 0.0
        %1158 = vmatprep.subr.mxu0 0.0
        %1159 = vmatpush1.msra.mxu0 0.0
        %1160 = vmatprep.subr.mxu0 0.0
        %1161 = vmatpush1.msra.mxu0 0.0
        %1162 = vmatprep.subr.mxu0 0.0
        %1163 = vmatpush1.msra.mxu0 0.0
        %1164 = vmatprep.subr.mxu0 0.0
        %1165 = vmatpush1.msra.mxu0 0.0
        %1166 = vmatprep.subr.mxu0 0.0
        %1167 = vmatpush1.msra.mxu0 0.0
        %1168 = vmatprep.subr.mxu0 0.0
        %1169 = vmatpush1.msra.mxu0 0.0
        %1170 = vmatprep.subr.mxu0 0.0
        %1171 = vmatpush1.msra.mxu0 0.0
        %1172 = vmatprep.subr.mxu0 0.0
        %1173 = vmatpush1.msra.mxu0 0.0
        %1174 = vmatprep.subr.mxu0 0.0
        %1175 = vmatpush1.msra.mxu0 0.0
        %1176 = vmatprep.subr.mxu0 0.0
        %1177 = vmatpush1.msra.mxu0 0.0
        %1178 = vmatprep.subr.mxu0 0.0
        %1179 = vmatpush1.msra.mxu0 0.0
        %1180 = vmatprep.mubr.f32.mxu0 0.0
        %1181 = vmatmul.mubr.f32.gmra.mrb[0].mxu0 %v1114
        %v1182 = vpop.f32.mrb[0].mxu0
        %v1183 = vadd.f32 0.0, %v1182
        %v1184 = vpop.f32.mrb[0].mxu0
        %1185 = vdwg.mxu0
        %v1186 = vrcp.pop %v1112
        %v1187 = vmul.f32 1.0, %v1186
        %v1188 = vmul.f32 %v1183, %v1187
        %s1189 = scalar_lea.vmem %s506, 24 [#allocation6]
        %v1190 = vld [vmem:[%s1189] sm:$0xff]
        %s1191 = scalar_lea.vmem %s515, 24 [#allocation8]
        %v1192 = vld [vmem:[%s1191] sm:$0xff]
        %1193 = vrot.lane.b32.xlu0 %v682, 104
        %v1194 = vpop.permute.xlu0 %1193
        %v1195 = vsel %vm687, %v1194, 0
        %v1198 = vsel %vm687, %v1190, 0
        %1200 = vmatprep.subr.mxu0 0.0
        %1201 = vmatpush1.xpose.msra.mxu0 %v1198
        %1202 = vmatprep.subr.mxu0 0.0
        %1203 = vmatpush1.xpose.msra.mxu0 0.0
        %1204 = vmatprep.subr.mxu0 0.0
        %1205 = vmatpush1.xpose.msra.mxu0 0.0
        %1206 = vmatprep.subr.mxu0 0.0
        %1207 = vmatpush1.xpose.msra.mxu0 0.0
        %1208 = vmatprep.subr.mxu0 0.0
        %1209 = vmatpush1.xpose.msra.mxu0 0.0
        %1210 = vmatprep.subr.mxu0 0.0
        %1211 = vmatpush1.xpose.msra.mxu0 0.0
        %1212 = vmatprep.subr.mxu0 0.0
        %1213 = vmatpush1.xpose.msra.mxu0 0.0
        %1214 = vmatprep.subr.mxu0 0.0
        %1215 = vmatpush1.xpose.msra.mxu0 0.0
        %1216 = vmatprep.subr.mxu0 0.0
        %1217 = vmatpush1.xpose.msra.mxu0 0.0
        %1218 = vmatprep.subr.mxu0 0.0
        %1219 = vmatpush1.xpose.msra.mxu0 0.0
        %1220 = vmatprep.subr.mxu0 0.0
        %1221 = vmatpush1.xpose.msra.mxu0 0.0
        %1222 = vmatprep.subr.mxu0 0.0
        %1223 = vmatpush1.xpose.msra.mxu0 0.0
        %1224 = vmatprep.subr.mxu0 0.0
        %1225 = vmatpush1.xpose.msra.mxu0 0.0
        %1226 = vmatprep.subr.mxu0 0.0
        %1227 = vmatpush1.xpose.msra.mxu0 0.0
        %1228 = vmatprep.subr.mxu0 0.0
        %1229 = vmatpush1.xpose.msra.mxu0 0.0
        %1230 = vmatprep.subr.mxu0 0.0
        %1231 = vmatpush1.xpose.msra.mxu0 0.0
        %1232 = vmatprep.subr.mxu0 0.0
        %1233 = vmatpush1.xpose.msra.mxu0 0.0
        %1234 = vmatprep.subr.mxu0 0.0
        %1235 = vmatpush1.xpose.msra.mxu0 0.0
        %1236 = vmatprep.subr.mxu0 0.0
        %1237 = vmatpush1.xpose.msra.mxu0 0.0
        %1238 = vmatprep.subr.mxu0 0.0
        %1239 = vmatpush1.xpose.msra.mxu0 0.0
        %1240 = vmatprep.subr.mxu0 0.0
        %1241 = vmatpush1.xpose.msra.mxu0 0.0
        %1242 = vmatprep.subr.mxu0 0.0
        %1243 = vmatpush1.xpose.msra.mxu0 0.0
        %1244 = vmatprep.subr.mxu0 0.0
        %1245 = vmatpush1.xpose.msra.mxu0 0.0
        %1246 = vmatprep.subr.mxu0 0.0
        %1247 = vmatpush1.xpose.msra.mxu0 0.0
        %1248 = vmatprep.subr.mxu0 0.0
        %1249 = vmatpush1.xpose.msra.mxu0 0.0
        %1250 = vmatprep.subr.mxu0 0.0
        %1251 = vmatpush1.xpose.msra.mxu0 0.0
        %1252 = vmatprep.subr.mxu0 0.0
        %1253 = vmatpush1.xpose.msra.mxu0 0.0
        %1254 = vmatprep.subr.mxu0 0.0
        %1255 = vmatpush1.xpose.msra.mxu0 0.0
        %1256 = vmatprep.subr.mxu0 0.0
        %1257 = vmatpush1.xpose.msra.mxu0 0.0
        %1258 = vmatprep.subr.mxu0 0.0
        %1259 = vmatpush1.xpose.msra.mxu0 0.0
        %1260 = vmatprep.subr.mxu0 0.0
        %1261 = vmatpush1.xpose.msra.mxu0 0.0
        %1262 = vmatprep.subr.mxu0 0.0
        %1263 = vmatpush1.xpose.msra.mxu0 0.0
        %1264 = vmatprep.mubr.f32.mxu0 0.0
        %1265 = vmatmul.mubr.f32.gmra.mrb[0].mxu0 %v1195
        %v1266 = vpop.f32.mrb[0].mxu0
        %v1267 = vadd.f32 0.0, %v1266
        %v1268 = vpop.f32.mrb[0].mxu0
        %1269 = vdwg.mxu0
        %s1270 = scalar_lea.vmem %s524, 24 [#allocation9]
        %v1271 = vld [vmem:[%s1270] sm:$0xff]
        %v1272 = vsub.f32 %v1267, %v1271
        %v1273 = vsel %vm687, %v1272, -inf
        %1274 = vmax.xlane.f32.xlu0 %v1273
        %v1275 = vpop.xlane.xlu0 %1274
        %v1276 = vsub.f32 %v1272, %v1275
        %v1277 = vmul.f32 %v1276, 1.442695
        %v1278 = vpow.pop %v1277
        %v1279 = vsel %vm687, %v1278, 0.0
        %1280 = vadd.xlane.f32.xlu0 %v1279
        %v1281 = vpop.xlane.xlu0 %1280
        %v1283 = vsel %vm687, %v1278, 0
        %1285 = vmatprep.subr.mxu0 0.0
        %1286 = vmatpush1.msra.mxu0 %v1192
        %1287 = vmatprep.subr.mxu0 0.0
        %1288 = vmatpush1.msra.mxu0 0.0
        %1289 = vmatprep.subr.mxu0 0.0
        %1290 = vmatpush1.msra.mxu0 0.0
        %1291 = vmatprep.subr.mxu0 0.0
        %1292 = vmatpush1.msra.mxu0 0.0
        %1293 = vmatprep.subr.mxu0 0.0
        %1294 = vmatpush1.msra.mxu0 0.0
        %1295 = vmatprep.subr.mxu0 0.0
        %1296 = vmatpush1.msra.mxu0 0.0
        %1297 = vmatprep.subr.mxu0 0.0
        %1298 = vmatpush1.msra.mxu0 0.0
        %1299 = vmatprep.subr.mxu0 0.0
        %1300 = vmatpush1.msra.mxu0 0.0
        %1301 = vmatprep.subr.mxu0 0.0
        %1302 = vmatpush1.msra.mxu0 0.0
        %1303 = vmatprep.subr.mxu0 0.0
        %1304 = vmatpush1.msra.mxu0 0.0
        %1305 = vmatprep.subr.mxu0 0.0
        %1306 = vmatpush1.msra.mxu0 0.0
        %1307 = vmatprep.subr.mxu0 0.0
        %1308 = vmatpush1.msra.mxu0 0.0
        %1309 = vmatprep.subr.mxu0 0.0
        %1310 = vmatpush1.msra.mxu0 0.0
        %1311 = vmatprep.subr.mxu0 0.0
        %1312 = vmatpush1.msra.mxu0 0.0
        %1313 = vmatprep.subr.mxu0 0.0
        %1314 = vmatpush1.msra.mxu0 0.0
        %1315 = vmatprep.subr.mxu0 0.0
        %1316 = vmatpush1.msra.mxu0 0.0
        %1317 = vmatprep.subr.mxu0 0.0
        %1318 = vmatpush1.msra.mxu0 0.0
        %1319 = vmatprep.subr.mxu0 0.0
        %1320 = vmatpush1.msra.mxu0 0.0
        %1321 = vmatprep.subr.mxu0 0.0
        %1322 = vmatpush1.msra.mxu0 0.0
        %1323 = vmatprep.subr.mxu0 0.0
        %1324 = vmatpush1.msra.mxu0 0.0
        %1325 = vmatprep.subr.mxu0 0.0
        %1326 = vmatpush1.msra.mxu0 0.0
        %1327 = vmatprep.subr.mxu0 0.0
        %1328 = vmatpush1.msra.mxu0 0.0
        %1329 = vmatprep.subr.mxu0 0.0
        %1330 = vmatpush1.msra.mxu0 0.0
        %1331 = vmatprep.subr.mxu0 0.0
        %1332 = vmatpush1.msra.mxu0 0.0
        %1333 = vmatprep.subr.mxu0 0.0
        %1334 = vmatpush1.msra.mxu0 0.0
        %1335 = vmatprep.subr.mxu0 0.0
        %1336 = vmatpush1.msra.mxu0 0.0
        %1337 = vmatprep.subr.mxu0 0.0
        %1338 = vmatpush1.msra.mxu0 0.0
        %1339 = vmatprep.subr.mxu0 0.0
        %1340 = vmatpush1.msra.mxu0 0.0
        %1341 = vmatprep.subr.mxu0 0.0
        %1342 = vmatpush1.msra.mxu0 0.0
        %1343 = vmatprep.subr.mxu0 0.0
        %1344 = vmatpush1.msra.mxu0 0.0
        %1345 = vmatprep.subr.mxu0 0.0
        %1346 = vmatpush1.msra.mxu0 0.0
        %1347 = vmatprep.subr.mxu0 0.0
        %1348 = vmatpush1.msra.mxu0 0.0
        %1349 = vmatprep.mubr.f32.mxu0 0.0
        %1350 = vmatmul.mubr.f32.gmra.mrb[0].mxu0 %v1283
        %v1351 = vpop.f32.mrb[0].mxu0
        %v1352 = vadd.f32 0.0, %v1351
        %v1353 = vpop.f32.mrb[0].mxu0
        %1354 = vdwg.mxu0
        %v1355 = vrcp.pop %v1281
        %v1356 = vmul.f32 1.0, %v1355
        %v1357 = vmul.f32 %v1352, %v1356
        %1359 = vrot.lane.b32.xlu0 %v1019, 8
        %v1360 = vpop.permute.xlu0 %1359
        %1363 = vrot.lane.b32.xlu0 %v1188, 16
        %v1364 = vpop.permute.xlu0 %1363
        %1367 = vrot.lane.b32.xlu0 %v1357, 24
        %v1368 = vpop.permute.xlu0 %1367
        %v1370 = vsel %vm687, %v850, %v1360
        %vm1371 = vcmask 130048
        %v1372 = vsel %vm1371, %v1370, %v1364
        %vm1373 = vcmask 195584
        %v1374 = vsel %vm1373, %v1372, %v1368
        %v1375 = vld [vmem:[#allocation2] sm:$0xff]
        %v1376 = vld [vmem:[#allocation12] sm:$0xff]
        %v1377 = vld [vmem:[#allocation12 + $0x8] sm:$0xff]
        %v1378 = vld [vmem:[#allocation12 + $0x10] sm:$0xff]
        %v1379 = vld [vmem:[#allocation12 + $0x18] sm:$0xff]
        %v1381 = vsel %vm611, %v1374, 0
        %1383 = vmatprep.subr.mxu0 0.0
        %1384 = vmatpush1.msra.mxu0 %v1376
        %1385 = vmatprep.subr.mxu0 0.0
        %1386 = vmatpush1.msra.mxu0 %v1377
        %1387 = vmatprep.subr.mxu0 0.0
        %1388 = vmatpush1.msra.mxu0 %v1378
        %1389 = vmatprep.subr.mxu0 0.0
        %1390 = vmatpush1.msra.mxu0 %v1379
        %1391 = vmatprep.subr.mxu0 0.0
        %1392 = vmatpush1.msra.mxu0 0.0
        %1393 = vmatprep.subr.mxu0 0.0
        %1394 = vmatpush1.msra.mxu0 0.0
        %1395 = vmatprep.subr.mxu0 0.0
        %1396 = vmatpush1.msra.mxu0 0.0
        %1397 = vmatprep.subr.mxu0 0.0
        %1398 = vmatpush1.msra.mxu0 0.0
        %1399 = vmatprep.subr.mxu0 0.0
        %1400 = vmatpush1.msra.mxu0 0.0
        %1401 = vmatprep.subr.mxu0 0.0
        %1402 = vmatpush1.msra.mxu0 0.0
        %1403 = vmatprep.subr.mxu0 0.0
        %1404 = vmatpush1.msra.mxu0 0.0
        %1405 = vmatprep.subr.mxu0 0.0
        %1406 = vmatpush1.msra.mxu0 0.0
        %1407 = vmatprep.subr.mxu0 0.0
        %1408 = vmatpush1.msra.mxu0 0.0
        %1409 = vmatprep.subr.mxu0 0.0
        %1410 = vmatpush1.msra.mxu0 0.0
        %1411 = vmatprep.subr.mxu0 0.0
        %1412 = vmatpush1.msra.mxu0 0.0
        %1413 = vmatprep.subr.mxu0 0.0
        %1414 = vmatpush1.msra.mxu0 0.0
        %1415 = vmatprep.subr.mxu0 0.0
        %1416 = vmatpush1.msra.mxu0 0.0
        %1417 = vmatprep.subr.mxu0 0.0
        %1418 = vmatpush1.msra.mxu0 0.0
        %1419 = vmatprep.subr.mxu0 0.0
        %1420 = vmatpush1.msra.mxu0 0.0
        %1421 = vmatprep.subr.mxu0 0.0
        %1422 = vmatpush1.msra.mxu0 0.0
        %1423 = vmatprep.subr.mxu0 0.0
        %1424 = vmatpush1.msra.mxu0 0.0
        %1425 = vmatprep.subr.mxu0 0.0
        %1426 = vmatpush1.msra.mxu0 0.0
        %1427 = vmatprep.subr.mxu0 0.0
        %1428 = vmatpush1.msra.mxu0 0.0
        %1429 = vmatprep.subr.mxu0 0.0
        %1430 = vmatpush1.msra.mxu0 0.0
        %1431 = vmatprep.subr.mxu0 0.0
        %1432 = vmatpush1.msra.mxu0 0.0
        %1433 = vmatprep.subr.mxu0 0.0
        %1434 = vmatpush1.msra.mxu0 0.0
        %1435 = vmatprep.subr.mxu0 0.0
        %1436 = vmatpush1.msra.mxu0 0.0
        %1437 = vmatprep.subr.mxu0 0.0
        %1438 = vmatpush1.msra.mxu0 0.0
        %1439 = vmatprep.subr.mxu0 0.0
        %1440 = vmatpush1.msra.mxu0 0.0
        %1441 = vmatprep.subr.mxu0 0.0
        %1442 = vmatpush1.msra.mxu0 0.0
        %1443 = vmatprep.subr.mxu0 0.0
        %1444 = vmatpush1.msra.mxu0 0.0
        %1445 = vmatprep.subr.mxu0 0.0
        %1446 = vmatpush1.msra.mxu0 0.0
        %1447 = vmatprep.mubr.f32.mxu0 0.0
        %1448 = vmatmul.mubr.f32.gmra.mrb[0].mxu0 %v1381
        %v1449 = vpop.f32.mrb[0].mxu0
        %v1450 = vadd.f32 0.0, %v1449
        %v1451 = vpop.f32.mrb[0].mxu0
        %1452 = vdwg.mxu0
        %v1453 = vadd.f32 %v1375, %v1450
        %1454 = vst.msk [vmem:[#allocation2] sm:$0xff] %vm611, %v1453
        // Predicated region
        $region89: #{tpu_custom_call.1} parent=59 // pred_check
          %p1455 = pneg %p593
        $region90: #{tpu_custom_call.1} parent=59 // pred_check_branch
          %1457 = sbr.rel (%p1455) target = $region92
        $region91: #{tpu_custom_call.1} parent=59 // pred_region
          %v1458 = vld [vmem:[#allocation2] sm:$0xff]
          %v1459 = vld [vmem:[%s7] sm:$0x1]
          %v1461 = vlaneseq
          %v1462 = vshrl.u32 %v1461, 7
          %v1463 = vsub.s32 0, %v1462
          %v1464 = vrot.slane %v1459, %v1463
          %v1466 = vadd.f32 %v1458, %v1464
          %v1467 = vadd.f32 %v599, %v1466
          %v1468 = vsel %vm611, %v1467, 0.0
          %1469 = vadd.xlane.f32.xlu0 %v1468
          %v1470 = vpop.xlane.xlu0 %1469
          %v1471 = vrcp.pop 32.0
          %v1472 = vmul.f32 %v1470, %v1471
          %v1473 = vsub.f32 %v1467, %v1472
          %v1474 = vmul.f32 %v1473, %v1473
          %v1475 = vsel %vm611, %v1474, 0.0
          %1476 = vadd.xlane.f32.xlu0 %v1475
          %v1477 = vpop.xlane.xlu0 %1476
          %v1478 = vmul.f32 %v1477, %v1471
          %v1479 = vadd.f32 %v1478, 1e-05
          %v1480 = vrsqrt.pop %v1479
          %v1481 = vmul.f32 %v1473, %v1480
          %v1482 = vld [vmem:[%s8] sm:$0x1]
          %v1484 = vlaneseq
          %v1485 = vshrl.u32 %v1484, 7
          %v1486 = vsub.s32 0, %v1485
          %v1487 = vrot.slane %v1482, %v1486
          %v1489 = vmul.f32 %v1481, %v1487
          %v1490 = vld [vmem:[%s9] sm:$0x1]
          %v1492 = vlaneseq
          %v1493 = vshrl.u32 %v1492, 7
          %v1494 = vsub.s32 0, %v1493
          %v1495 = vrot.slane %v1490, %v1494
          %v1497 = vadd.f32 %v1489, %v1495
          %1498 = vst.msk [vmem:[%s586] sm:$0xff] %vm611, %v1497
        $region92: #{tpu_custom_call.1} parent=59 // pred_fallthru
          _
        %s1499 = sand.u32 %s318, 1
        %s1500 = scalar_lea.sflag [#allocation5], %s1499
        %s1501 = sand.u32 %s318, 1
        %s1502 = smul.addr %s1501, 8
        %s1503 = scalar_lea.vmem [#allocation14], %s1502
        // Predicated region
        $region93: #{tpu_custom_call.1} parent=59 // pred_check
          %p1504 = pneg %p328
        $region94: #{tpu_custom_call.1} parent=59 // pred_check_branch
          %1506 = sbr.rel (%p1504) target = $region96
        $region95: #{tpu_custom_call.1} parent=59 // pred_region
          %s1508 = ssub.s32 128, 128
          %1509 = vsyncadd %s1500, %s1508
          %s1510 = sadd.s32 %s40, %s39
          %s1511 = smul.addr %s1510, 128
          %s1512 = scalar_lea.hbm %s10, %s1511
          %s1514 = sshll.u32 %s1503, 4
          %s1515 = int_to_ptr.vmem [resolvable:$true] %s1514
          %1517 = dma.vmem_to_hbm [thread:$0]  %s1515, 128, %s1512, %s1500
        $region96: #{tpu_custom_call.1} parent=59 // pred_fallthru
          _
      $region60: #{tpu_custom_call.1} parent=5 // pred_fallthru
        _
      %p1518 = scmp.le.s32.totalorder 2, %s29
      // Predicated region
      $region97: #{tpu_custom_call.1} parent=5 // pred_check
        %p1519 = pneg %p1518
      $region98: #{tpu_custom_call.1} parent=5 // pred_check_branch
        %1521 = sbr.rel (%p1519) target = $region100
      $region99: #{tpu_custom_call.1} parent=5 // pred_region
        %s1522 = ssub.s32 %s29, 2
        // Predicated region
        $region101: #{tpu_custom_call.1} parent=99 // pred_check
          %p1523 = pneg %p334
        $region102: #{tpu_custom_call.1} parent=99 // pred_check_branch
          %1525 = sbr.rel (%p1523) target = $region104
        $region103: #{tpu_custom_call.1} parent=99 // pred_region
          %s1526 = sand.u32 %s319, 1
          %s1527 = scalar_lea.sflag [#allocation5], %s1526
          %s1528 = sand.u32 %s319, 1
          %s1529 = smul.addr %s1528, 8
          %s1530 = scalar_lea.vmem [#allocation14], %s1529
          %1531 = dma.done %s1527, 128
        $region104: #{tpu_custom_call.1} parent=99 // pred_fallthru
          _
      $region100: #{tpu_custom_call.1} parent=5 // pred_fallthru
        _
    $region6: #{tpu_custom_call.1} parent=1 // loop_footer
      %s33 = sadd.s32 1, %s29
    $region7: #{tpu_custom_call.1} parent=1 // loop_footer_branch
      %28 = sbr.rel target = $region3
    $region8: #{tpu_custom_call.1} parent=1 // loop_exit
      _
    %1532 = vsyncpa [#allocation4], 1
    %s1533 = scalar_lea.sflag [#allocation4], 1
    %1534 = vsyncpa %s1533, 1
    %1535 = vsyncpa [#allocation7], 1
    %s1536 = scalar_lea.sflag [#allocation7], 1
    %1537 = vsyncpa %s1536, 1
    %1538 = vsyncpa [#allocation10], 1
    %s1539 = scalar_lea.sflag [#allocation10], 1
    %1540 = vsyncpa %s1539, 1
    %1541 = vsyncpa [#allocation13], 1
    %1542 = vsyncpa [#allocation5], 1
    %s1543 = scalar_lea.sflag [#allocation5], 1
    %1544 = vsyncpa %s1543, 1

</llo_original>
